<compile_context>
chip_gen: v7x
topology: tpu7x:2x2x1
jax: 0.10.0
libtpu: 0.0.40
codegen_flags: <defaults>
</compile_context>

<pallas_src>
import functools
import math

import jax
import jax.numpy as jnp
from jax import lax
from jax.experimental import pallas as pl
from jax.experimental.pallas import tpu as pltpu


def _pos2d_kernel(col_ref, wk_ref, ph_ref, o_ref):
    """One (tile_h, W//pack, pack*hidden) tile: row term + resident column term."""
    tile_h, _, lanes = o_ref.shape
    row0 = pl.program_id(0) * tile_h
    # Row indices for this tile, broadcast over the (resident) per-lane pattern.
    i = (row0 + lax.broadcasted_iota(jnp.int32, (tile_h, 1, lanes), 0)).astype(jnp.float32)
    # Single sin with folded phase (phase = 0 -> sin, pi/2 -> cos); halves the
    # transcendental work vs. computing sin and cos and selecting.
    row_term = jnp.sin(i * wk_ref[...] + ph_ref[...])          # (tile_h, 1, lanes)
    # Broadcast add against the precomputed column term, one dense block store.
    o_ref[...] = (row_term + col_ref[...]).astype(o_ref.dtype)


def _chip_tiling():
    """Return (force_multi_step, block_bytes_target) for the local TPU generation."""
    kind = ""
    try:
        kind = jax.devices()[0].device_kind.lower()
    except Exception:
        pass
    if "v7" in kind:
        # 2 TensorCores per chip: keep >=2 parallel grid steps, ~4 MiB blocks.
        return True, 4 * 1024 * 1024
    # v5e / v6e: single TensorCore -> the grid is a serial loop; use the
    # biggest block that fits (~8 MiB, double-buffered output ~16 MiB).
    return False, 8 * 1024 * 1024


def _choose_pack(width, hidden):
    """Pick how many consecutive positions to fold into the 128-lane axis."""
    best_key, best_pack = None, 1
    for pack in range(1, width + 1):
        if width % pack:
            continue
        lanes = pack * hidden
        if pack > 1 and lanes > 1024:
            continue
        wdim = width // pack
        lane_util = lanes / float(pl.cdiv(lanes, 128) * 128)   # lane-density of vst
        sub_util = wdim / float(pl.cdiv(wdim, 8) * 8)          # sublane-density of vst
        key = (lane_util * sub_util, lanes)                    # prefer wider lanes on ties
        if best_key is None or key > best_key:
            best_key, best_pack = key, pack
    return best_pack


def _lane_tables(width, hidden, pack):
    """Precompute (col_term, w_k, phase) lane tables once, in plain JAX (cached)."""
    wdim = width // pack
    lanes = pack * hidden
    lane = jnp.arange(lanes, dtype=jnp.int32)
    k = lane % hidden                                  # feature index
    sub_j = lane // hidden                             # column offset inside a folded group
    km4 = k % 4
    d = (hidden - km4 + 3) // 4                        # len(arange(k%4, hidden, 4))
    kf = k.astype(jnp.float32)
    w_k = 1.0 / (10000.0 ** (2.0 * kf / d.astype(jnp.float32)))
    # Row-term function: sin for even k, cos for odd k -> phase shift of pi/2.
    phase = jnp.where((k % 2) == 0, 0.0, 0.5 * math.pi).astype(jnp.float32)
    # Column term: f2 = sin for k%4 in {0,1}, cos otherwise.
    f2_is_sin = km4 < 2
    j = (jnp.arange(wdim, dtype=jnp.int32)[:, None] * pack + sub_j[None, :]).astype(jnp.float32)
    arg_w = j * w_k[None, :]
    col = jnp.where(f2_is_sin[None, :], jnp.sin(arg_w), jnp.cos(arg_w))
    return (col.reshape(1, wdim, lanes).astype(jnp.float32),
            w_k.reshape(1, 1, lanes).astype(jnp.float32),
            phase.reshape(1, 1, lanes))


@functools.lru_cache(maxsize=None)
def _pos_table(height, width, hidden, block_bytes=None):
    """Compute (once per config) the (H*W, hidden) PositionalEncoding2D table."""
    assert hidden % 2 == 0, "Hidden dim should be even."
    pack = _choose_pack(width, hidden)
    wdim = width // pack
    lanes = pack * hidden

    col, w_k, phase = _lane_tables(width, hidden, pack)

    force_split, target = _chip_tiling()
    if block_bytes is not None:
        target = block_bytes
    row_bytes = wdim * lanes * 4                       # == width * hidden * 4
    tile_h = max(1, min(height, target // max(row_bytes, 1)))
    if force_split and tile_h >= height and height > 1:
        tile_h = pl.cdiv(height, 2)                    # give both v7x TCs a block
    num_tiles = pl.cdiv(height, tile_h)

    # Double-buffered output block + the small resident inputs + slack.
    block_out_bytes = tile_h * row_bytes
    aux_bytes = (wdim + 2) * lanes * 4
    vmem_limit = int(2 * block_out_bytes + 2 * aux_bytes + (8 << 20))

    folded = pl.pallas_call(
        _pos2d_kernel,
        out_shape=jax.ShapeDtypeStruct((height, wdim, lanes), jnp.float32),
        grid=(num_tiles,),
        in_specs=[
            pl.BlockSpec((1, wdim, lanes), lambda r: (0, 0, 0)),  # col term, VMEM-resident
            pl.BlockSpec((1, 1, lanes), lambda r: (0, 0, 0)),     # w_k
            pl.BlockSpec((1, 1, lanes), lambda r: (0, 0, 0)),     # phase
        ],
        out_specs=pl.BlockSpec((tile_h, wdim, lanes), lambda r: (r, 0, 0)),
        compiler_params=pltpu.CompilerParams(
            dimension_semantics=("parallel",),
            vmem_limit_bytes=vmem_limit,
        ),
    )(col, w_k, phase)
    # Row-major-compatible unfold back to (seq, hidden): layout plumbing only.
    return folded.reshape(height * width, hidden)


def positional_encoding_2d_table(height, width, hidden_dim):
    """The (H*W, hidden) table; prefer this and fuse `x + pos` in the consumer."""
    return _pos_table(height, width, hidden_dim)


def positional_encoding_2d(t, height, width, hidden_dim):
    """Pallas equivalent of PositionalEncoding2D(height, width, hidden_dim).forward(t)."""
    b, s, c = t.shape
    assert s == height * width and c == hidden_dim, (t.shape, height, width, hidden_dim)
    pos = _pos_table(height, width, hidden_dim)        # cached: kernel runs once per config
    # TODO(synk): torch's .expand is a zero-copy view; a JAX output must be
    # materialized, so this broadcast writes b*S*C floats to HBM. Use
    # positional_encoding_2d_table() and fuse the add downstream when possible.
    return jnp.broadcast_to(pos[None], (b, s, c))


def _reference_pos(height, width, hidden):
    """Pure-JAX port of the PyTorch __init__ table construction, for verification."""
    t_h, t_w = jnp.meshgrid(jnp.arange(height), jnp.arange(width), indexing="ij")
    t_h = t_h.reshape(-1, 1).astype(jnp.float32)
    t_w = t_w.reshape(-1, 1).astype(jnp.float32)
    pos = jnp.zeros((height * width, hidden), jnp.float32)
    functions = [jnp.sin, jnp.cos]
    for i in range(4):
        k = jnp.arange(i, hidden, 4, dtype=jnp.float32)
        d = k.shape[0]
        w_k = 1.0 / (10000.0 ** (2.0 * k / d))
        f1, f2 = functions[i % 2], functions[i // 2]
        pos = pos.at[:, i::4].set(f1(t_h * w_k) + f2(t_w * w_k))
    return pos


if __name__ == "__main__":
    def check_table(height, width, hidden, block_bytes=None):
        got = jax.block_until_ready(_pos_table(height, width, hidden, block_bytes))
        ref = _reference_pos(height, width, hidden)
        assert got.shape == (height * width, hidden), got.shape
        err = float(jnp.max(jnp.abs(got - ref)))
        assert err < 2e-4, (height, width, hidden, err)

    def check_forward(b, height, width, hidden):
        s = height * width
        t = jax.random.normal(jax.random.PRNGKey(0), (b, s, hidden), dtype=jnp.float32)
        out = jax.block_until_ready(positional_encoding_2d(t, height, width, hidden))
        ref = jnp.broadcast_to(_reference_pos(height, width, hidden)[None], (b, s, hidden))
        assert out.shape == (b, s, hidden), out.shape
        assert out.dtype == jnp.float32, out.dtype
        err = float(jnp.max(jnp.abs(out - ref)))
        assert err < 2e-4, (b, height, width, hidden, err)

    check_forward(2, 16, 32, 32)            # main config: pack=4 -> (16, 8, 128) folded slab
    check_table(13, 16, 32, block_bytes=8192)  # forced small blocks: multi-tile + partial last block
    check_table(8, 8, 128)                  # hidden >= 128: pack=1, naturally lane-dense
    check_forward(2, 16, 32, 32)            # second call hits the lru_cache (no re-run)
    print("KERNEL_OK")
</pallas_src>

<mosaic_0001>
module attributes {stable_mosaic.version = 11 : i64} {
  func.func @_pos2d_kernel(%arg0: i32, %arg1: memref<1x8x128xf32, #tpu.memory_space<vmem>>, %arg2: memref<1x1x128xf32, #tpu.memory_space<vmem>>, %arg3: memref<1x1x128xf32, #tpu.memory_space<vmem>>, %arg4: memref<16x8x128xf32, #tpu.memory_space<vmem>>) attributes {dimension_semantics = [#tpu.dimension_semantics<parallel>], iteration_bounds = array<i64: 1>, scalar_prefetch = 0 : i64, scratch_operands = 0 : i64, tpu.core_type = #tpu.core_type<tc>, window_params = [{pipeline_mode = #tpu.pipeline_mode<synchronous>, transform_indices = @transform_0, window_bounds = array<i64: 1, 8, 128>}, {pipeline_mode = #tpu.pipeline_mode<synchronous>, transform_indices = @transform_1, window_bounds = array<i64: 1, 1, 128>}, {pipeline_mode = #tpu.pipeline_mode<synchronous>, transform_indices = @transform_2, window_bounds = array<i64: 1, 1, 128>}, {transform_indices = @transform_3, window_bounds = array<i64: 16, 8, 128>}]} {
    %c16_i32 = arith.constant 16 : i32
    %0 = arith.muli %arg0, %c16_i32 : i32
    %1 = tpu.iota {dimensions = array<i32: 0>} : vector<16x1x128xi32>
    %2 = vector.broadcast %0 : i32 to vector<16x1x128xi32>
    %3 = arith.addi %2, %1 : vector<16x1x128xi32>
    %4 = arith.sitofp %3 : vector<16x1x128xi32> to vector<16x1x128xf32>
    %c0 = arith.constant 0 : index
    %c0_0 = arith.constant 0 : index
    %c0_1 = arith.constant 0 : index
    %5 = vector.load %arg2[%c0, %c0_0, %c0_1] : memref<1x1x128xf32, #tpu.memory_space<vmem>>, vector<1x1x128xf32>
    %6 = vector.broadcast %5 : vector<1x1x128xf32> to vector<16x1x128xf32>
    %7 = arith.mulf %4, %6 : vector<16x1x128xf32>
    %c0_2 = arith.constant 0 : index
    %c0_3 = arith.constant 0 : index
    %c0_4 = arith.constant 0 : index
    %8 = vector.load %arg3[%c0_2, %c0_3, %c0_4] : memref<1x1x128xf32, #tpu.memory_space<vmem>>, vector<1x1x128xf32>
    %9 = vector.broadcast %8 : vector<1x1x128xf32> to vector<16x1x128xf32>
    %10 = arith.addf %7, %9 : vector<16x1x128xf32>
    %11 = math.sin %10 : vector<16x1x128xf32>
    %c0_5 = arith.constant 0 : index
    %c0_6 = arith.constant 0 : index
    %c0_7 = arith.constant 0 : index
    %12 = vector.load %arg1[%c0_5, %c0_6, %c0_7] : memref<1x8x128xf32, #tpu.memory_space<vmem>>, vector<1x8x128xf32>
    %13 = vector.broadcast %11 : vector<16x1x128xf32> to vector<16x8x128xf32>
    %14 = vector.broadcast %12 : vector<1x8x128xf32> to vector<16x8x128xf32>
    %15 = arith.addf %13, %14 : vector<16x8x128xf32>
    %c0_8 = arith.constant 0 : index
    %c0_9 = arith.constant 0 : index
    %c0_10 = arith.constant 0 : index
    %16 = vector.load %arg4[%c0_8, %c0_9, %c0_10] : memref<16x8x128xf32, #tpu.memory_space<vmem>>, vector<16x8x128xf32>
    tpu.vector_store %arg4[%c0_8, %c0_9, %c0_10], %15 {strides = array<i32>} : memref<16x8x128xf32, #tpu.memory_space<vmem>>, vector<16x8x128xf32>,
    return
  }
  func.func @transform_0(%arg0: i32) -> (i32, i32, i32) {
    %c0_i32 = arith.constant 0 : i32
    %c0_i32_0 = arith.constant 0 : i32
    %c0_i32_1 = arith.constant 0 : i32
    %c0_i32_2 = arith.constant 0 : i32
    return %c0_i32, %c0_i32_0, %c0_i32_1 : i32, i32, i32
  }
  func.func @transform_1(%arg0: i32) -> (i32, i32, i32) {
    %c0_i32 = arith.constant 0 : i32
    %c0_i32_0 = arith.constant 0 : i32
    %c0_i32_1 = arith.constant 0 : i32
    %c0_i32_2 = arith.constant 0 : i32
    return %c0_i32, %c0_i32_0, %c0_i32_1 : i32, i32, i32
  }
  func.func @transform_2(%arg0: i32) -> (i32, i32, i32) {
    %c0_i32 = arith.constant 0 : i32
    %c0_i32_0 = arith.constant 0 : i32
    %c0_i32_1 = arith.constant 0 : i32
    %c0_i32_2 = arith.constant 0 : i32
    return %c0_i32, %c0_i32_0, %c0_i32_1 : i32, i32, i32
  }
  func.func @transform_3(%arg0: i32) -> (i32, i32, i32) {
    %c0_i32 = arith.constant 0 : i32
    %c0_i32_0 = arith.constant 0 : i32
    %c0_i32_1 = arith.constant 0 : i32
    return %arg0, %c0_i32, %c0_i32_0 : i32, i32, i32
  }
}

</mosaic_0001>

<llo_original>
// kernel: tpu_custom_call.1
$region0: #{tpu_custom_call.1}
  #allocation0 [shape = 'u32[]', space=smem, size = 0x4, offset = 0x4, fixed_abs, tag = 'smem constant byte address 0x4 - core index']
  #allocation1 [shape = 'u32[144,128]{1,0:T(1,128)}', space=vmem, size = 0x12000, scoped, tag = 'internal scratch']
  %s0 = inlined_call_operand.hbm [shape: f32[1,8,128], index: 0, kind: input, shape index: {}]
  %s1 = inlined_call_operand.vmem [shape: f32[1,1,128], index: 1, kind: input, shape index: {}]
  %s2 = inlined_call_operand.vmem [shape: f32[1,1,128], index: 2, kind: input, shape index: {}]
  %s3 = inlined_call_operand.hbm [shape: f32[16,8,128], index: 3, kind: output, shape index: {}]
  %s4 = sld [smem:[#allocation0]]
  $region26: #{tpu_custom_call.1} parent=0
    _
  %s6 = ssub.s32 1, %s4
  %s7 = scalar_select 0, %s6, %s4
  $region1: #{tpu_custom_call.1} parent=0
    #allocation2 [shape = 'u8[4096]{0}', space=vmem, size = 0x1000, scoped, tag = 'input window, operand 0, single buffered']
    #allocation3 [shape = 's32[1]{0}', space=sflag, size = 0x4, scoped, tag = 'scoped memory for tpu_custom_call.1']
    #allocation4 [shape = 's32[1]{0}', space=sflag, size = 0x4, scoped, tag = 'scoped memory for tpu_custom_call.1']
    #allocation5 [shape = 'u8[65536]{0}', space=vmem, size = 0x10000, scoped, tag = 'output window, operand 0, single buffered']
    %8 = vsyncpa [#allocation3], 0
    %9 = vsyncpa [#allocation4], 0
    // Predicated region
    $region2: #{tpu_custom_call.1} parent=1 // pred_check
      _
    $region3: #{tpu_custom_call.1} parent=1 // pred_check_branch
      %11 = sbr.rel (0) target = $region5
    $region4: #{tpu_custom_call.1} parent=1 // pred_region
      %s13 = ssub.s32 128, 128
      %14 = vsyncadd [#allocation3], %s13
      %s16 = sshll.u32 [#allocation2], 4
      %s17 = int_to_ptr.vmem [resolvable:$true] %s16
      %19 = dma.hbm_to_vmem [thread:$0]  %s0, 128, %s17, [#allocation3]
    $region5: #{tpu_custom_call.1} parent=1 // pred_fallthru
      _
    // Predicated region
    $region6: #{tpu_custom_call.1} parent=1 // pred_check
      _
    $region7: #{tpu_custom_call.1} parent=1 // pred_check_branch
      %21 = sbr.rel (0) target = $region9
    $region8: #{tpu_custom_call.1} parent=1 // pred_region
      _
    $region9: #{tpu_custom_call.1} parent=1 // pred_fallthru
      _
    // Predicated region
    $region10: #{tpu_custom_call.1} parent=1 // pred_check
      _
    $region11: #{tpu_custom_call.1} parent=1 // pred_check_branch
      %23 = sbr.rel (0) target = $region13
    $region12: #{tpu_custom_call.1} parent=1 // pred_region
      _
    $region13: #{tpu_custom_call.1} parent=1 // pred_fallthru
      _
    // Predicated region
    $region14: #{tpu_custom_call.1} parent=1 // pred_check
      _
    $region15: #{tpu_custom_call.1} parent=1 // pred_check_branch
      %25 = sbr.rel (0) target = $region17
    $region16: #{tpu_custom_call.1} parent=1 // pred_region
      %26 = dma.done [#allocation3], 128
    $region17: #{tpu_custom_call.1} parent=1 // pred_fallthru
      _
    %s27 = smul.u32 0, 16
    %v28 = vstv %s27
    %v29 = vadd.s32 %v28, 1
    %v30 = vadd.s32 %v28, 2
    %v31 = vadd.s32 %v28, 3
    %v32 = vadd.s32 %v28, 4
    %v33 = vadd.s32 %v28, 5
    %v34 = vadd.s32 %v28, 6
    %v35 = vadd.s32 %v28, 7
    %v36 = vadd.s32 %v28, 8
    %v37 = vadd.s32 %v28, 9
    %v38 = vadd.s32 %v28, 10
    %v39 = vadd.s32 %v28, 11
    %v40 = vadd.s32 %v28, 12
    %v41 = vadd.s32 %v28, 13
    %v42 = vadd.s32 %v28, 14
    %v43 = vadd.s32 %v28, 15
    %v44 = vcvt.s32.f32 %v28
    %v45 = vcvt.s32.f32 %v29
    %v46 = vcvt.s32.f32 %v30
    %v47 = vcvt.s32.f32 %v31
    %v48 = vcvt.s32.f32 %v32
    %v49 = vcvt.s32.f32 %v33
    %v50 = vcvt.s32.f32 %v34
    %v51 = vcvt.s32.f32 %v35
    %v52 = vcvt.s32.f32 %v36
    %v53 = vcvt.s32.f32 %v37
    %v54 = vcvt.s32.f32 %v38
    %v55 = vcvt.s32.f32 %v39
    %v56 = vcvt.s32.f32 %v40
    %v57 = vcvt.s32.f32 %v41
    %v58 = vcvt.s32.f32 %v42
    %v59 = vcvt.s32.f32 %v43
    %v60 = vld [vmem:[%s1] sm:$0x1]
    %v61 = vmul.f32 %v44, %v60
    %v62 = vmul.f32 %v45, %v60
    %v63 = vmul.f32 %v46, %v60
    %v64 = vmul.f32 %v47, %v60
    %v65 = vmul.f32 %v48, %v60
    %v66 = vmul.f32 %v49, %v60
    %v67 = vmul.f32 %v50, %v60
    %v68 = vmul.f32 %v51, %v60
    %v69 = vmul.f32 %v52, %v60
    %v70 = vmul.f32 %v53, %v60
    %v71 = vmul.f32 %v54, %v60
    %v72 = vmul.f32 %v55, %v60
    %v73 = vmul.f32 %v56, %v60
    %v74 = vmul.f32 %v57, %v60
    %v75 = vmul.f32 %v58, %v60
    %v76 = vmul.f32 %v59, %v60
    %v77 = vld [vmem:[%s2] sm:$0x1]
    %v78 = vadd.f32 %v61, %v77
    %v79 = vadd.f32 %v62, %v77
    %v80 = vadd.f32 %v63, %v77
    %v81 = vadd.f32 %v64, %v77
    %v82 = vadd.f32 %v65, %v77
    %v83 = vadd.f32 %v66, %v77
    %v84 = vadd.f32 %v67, %v77
    %v85 = vadd.f32 %v68, %v77
    %v86 = vadd.f32 %v69, %v77
    %v87 = vadd.f32 %v70, %v77
    %v88 = vadd.f32 %v71, %v77
    %v89 = vadd.f32 %v72, %v77
    %v90 = vadd.f32 %v73, %v77
    %v91 = vadd.f32 %v74, %v77
    %v92 = vadd.f32 %v75, %v77
    %v93 = vadd.f32 %v76, %v77
    %v94 = vand.u32 2147483647, %v78
    %vm95 = vcmp.le.f32.partialorder %v94, 0.7853982
    %vm96 = vcmp.lt.s32.totalorder %v78, 0
    %v97 = vand.u32 %v78, 2139095040
    %v98 = vshrl.u32 %v97, 23
    %v99 = vsub.s32 %v98, 127
    %v100 = vand.u32 2147483647, %v78
    %v101 = vand.u32 %v100, 8388607
    %v102 = vor.u32 %v101, 8388608
    %v103 = vsub.s32 0, %v102
    %v104 = vadd.s32 %v99, 1
    %vm105 = vcmp.gt.s32.totalorder %v104, 0
    %v106 = vsel %vm105, %v104, 0
    %v107 = vshrl.u32 %v106, 5
    %v108 = vand.u32 %v106, 31
    %v109 = vsub.s32 32, %v108
    %v110 = vshrl.u32 683565275, %v109
    %v111 = vshll.u32 683565275, %v108
    %v112 = vshrl.u32 2475754826, %v109
    %v113 = vor.u32 %v111, %v112
    %v114 = vshll.u32 2475754826, %v108
    %v115 = vshrl.u32 2131351028, %v109
    %v116 = vor.u32 %v114, %v115
    %v117 = vshll.u32 2131351028, %v108
    %v118 = vshrl.u32 2102212464, %v109
    %v119 = vor.u32 %v117, %v118
    %v120 = vshll.u32 2102212464, %v108
    %v121 = vshrl.u32 920167782, %v109
    %v122 = vor.u32 %v120, %v121
    %v123 = vshll.u32 920167782, %v108
    %v124 = vshrl.u32 1326507024, %v109
    %v125 = vor.u32 %v123, %v124
    %vm126 = vcmp.lt.s32.totalorder %v107, 1
    %vm127 = vcmp.lt.s32.totalorder %v107, 2
    %vm128 = vcmp.lt.s32.totalorder %v107, 3
    %vm129 = vcmp.lt.s32.totalorder %v107, 4
    %v130 = vsel %vm126, %v110, %v113
    %v131 = vsel %vm129, %v119, 2102212464
    %v132 = vsel %vm128, %v116, %v131
    %v133 = vsel %vm127, %v130, %v132
    %v134 = vsel %vm126, %v113, %v116
    %v135 = vsel %vm129, %v122, 920167782
    %v136 = vsel %vm128, %v119, %v135
    %v137 = vsel %vm127, %v134, %v136
    %v138 = vsel %vm126, %v116, %v119
    %v139 = vsel %vm129, %v125, 1326507024
    %v140 = vsel %vm128, %v122, %v139
    %v141 = vsel %vm127, %v138, %v140
    %v142 = vshll.u32 %v102, 8
    %v143 = vmul.u32.u64.compose %v142, %v141
    %v144 = vextract.low.u32 %v143
    %v145 = vextract.high.u32 %v143
    %v146 = vmul.u32.u64.compose %v142, %v137
    %v147 = vextract.low.u32 %v146
    %v148 = vextract.high.u32 %v146
    %v149 = vmul.u32 %v142, %v133
    %v150 = vadd.s32 %v145, %v147
    %vm151 = vc.u32 %v145, %v147
    %v152 = vadd.s32 %v148, 1
    %v153 = vsel %vm151, %v152, %v148
    %v154 = vadd.s32 %v149, %v153
    %v155 = vadd.s32 %v154, 536870912
    %v156 = vshrl.u32 %v155, 30
    %v157 = vshll.u32 %v156, 30
    %v158 = vsub.s32 %v154, %v157
    %vm159 = vcmp.lt.s32.totalorder %v158, 0
    %v160 = vsub.s32 0, %v158
    %v161 = vsel %vm159, %v160, %v158
    %v162 = vclz %v161
    %v163 = vsub.s32 %v162, 2
    %vm164 = vcmp.gt.s32.totalorder 0, %v163
    %v165 = vsel %vm164, 0, %v163
    %v166 = vsub.s32 32, %v165
    %v167 = vshll.u32 %v158, %v165
    %v168 = vshrl.u32 %v150, %v166
    %v169 = vor.u32 %v167, %v168
    %v170 = vsub.s32 4294967266, %v165
    %v171 = vadd.s32 %v170, 127
    %v172 = vshll.u32 %v171, 23
    %v173 = vor.u32 4788187, %v172
    %v174 = vand.u32 2147483647, %v173
    %v176 = vcvt.s32.f32 %v169
    %v177 = vmul.f32 %v176, %v174
    %v178 = vxor.u32 %v177, 2147483648
    %v179 = vsel %vm96, %v178, %v177
    %v180 = vsub.s32 4, %v156
    %v181 = vsel %vm96, %v180, %v156
    %v182 = vsel %vm95, %v78, %v179
    %v183 = vsel %vm95, 0, %v181
    %v184 = vcosq.f32.pop %v182
    %v185 = vsinq.f32.pop %v182
    %vm186 = vweird.f32 %v78
    %v187 = vadd.s32 %v183, 3
    %v188 = vand.u32 %v187, 3
    %vm189 = vcmp.lt.s32.totalorder %v188, 2
    %vm190 = vcmp.eq.s32.totalorder %v188, 0
    %v191 = vxor.u32 %v185, 2147483648
    %v192 = vsel %vm190, %v184, %v191
    %vm193 = vcmp.eq.s32.totalorder %v188, 2
    %v194 = vxor.u32 %v184, 2147483648
    %v195 = vsel %vm193, %v194, %v185
    %v196 = vsel %vm189, %v192, %v195
    %v197 = vsel %vm186, nan, %v196
    %v198 = vand.u32 2147483647, %v79
    %vm199 = vcmp.le.f32.partialorder %v198, 0.7853982
    %vm200 = vcmp.lt.s32.totalorder %v79, 0
    %v201 = vand.u32 %v79, 2139095040
    %v202 = vshrl.u32 %v201, 23
    %v203 = vsub.s32 %v202, 127
    %v204 = vand.u32 2147483647, %v79
    %v205 = vand.u32 %v204, 8388607
    %v206 = vor.u32 %v205, 8388608
    %v207 = vsub.s32 0, %v206
    %v208 = vadd.s32 %v203, 1
    %vm209 = vcmp.gt.s32.totalorder %v208, 0
    %v210 = vsel %vm209, %v208, 0
    %v211 = vshrl.u32 %v210, 5
    %v212 = vand.u32 %v210, 31
    %v213 = vsub.s32 32, %v212
    %v214 = vshrl.u32 683565275, %v213
    %v215 = vshll.u32 683565275, %v212
    %v216 = vshrl.u32 2475754826, %v213
    %v217 = vor.u32 %v215, %v216
    %v218 = vshll.u32 2475754826, %v212
    %v219 = vshrl.u32 2131351028, %v213
    %v220 = vor.u32 %v218, %v219
    %v221 = vshll.u32 2131351028, %v212
    %v222 = vshrl.u32 2102212464, %v213
    %v223 = vor.u32 %v221, %v222
    %v224 = vshll.u32 2102212464, %v212
    %v225 = vshrl.u32 920167782, %v213
    %v226 = vor.u32 %v224, %v225
    %v227 = vshll.u32 920167782, %v212
    %v228 = vshrl.u32 1326507024, %v213
    %v229 = vor.u32 %v227, %v228
    %vm230 = vcmp.lt.s32.totalorder %v211, 1
    %vm231 = vcmp.lt.s32.totalorder %v211, 2
    %vm232 = vcmp.lt.s32.totalorder %v211, 3
    %vm233 = vcmp.lt.s32.totalorder %v211, 4
    %v234 = vsel %vm230, %v214, %v217
    %v235 = vsel %vm233, %v223, 2102212464
    %v236 = vsel %vm232, %v220, %v235
    %v237 = vsel %vm231, %v234, %v236
    %v238 = vsel %vm230, %v217, %v220
    %v239 = vsel %vm233, %v226, 920167782
    %v240 = vsel %vm232, %v223, %v239
    %v241 = vsel %vm231, %v238, %v240
    %v242 = vsel %vm230, %v220, %v223
    %v243 = vsel %vm233, %v229, 1326507024
    %v244 = vsel %vm232, %v226, %v243
    %v245 = vsel %vm231, %v242, %v244
    %v246 = vshll.u32 %v206, 8
    %v247 = vmul.u32.u64.compose %v246, %v245
    %v248 = vextract.low.u32 %v247
    %v249 = vextract.high.u32 %v247
    %v250 = vmul.u32.u64.compose %v246, %v241
    %v251 = vextract.low.u32 %v250
    %v252 = vextract.high.u32 %v250
    %v253 = vmul.u32 %v246, %v237
    %v254 = vadd.s32 %v249, %v251
    %vm255 = vc.u32 %v249, %v251
    %v256 = vadd.s32 %v252, 1
    %v257 = vsel %vm255, %v256, %v252
    %v258 = vadd.s32 %v253, %v257
    %v259 = vadd.s32 %v258, 536870912
    %v260 = vshrl.u32 %v259, 30
    %v261 = vshll.u32 %v260, 30
    %v262 = vsub.s32 %v258, %v261
    %vm263 = vcmp.lt.s32.totalorder %v262, 0
    %v264 = vsub.s32 0, %v262
    %v265 = vsel %vm263, %v264, %v262
    %v266 = vclz %v265
    %v267 = vsub.s32 %v266, 2
    %vm268 = vcmp.gt.s32.totalorder 0, %v267
    %v269 = vsel %vm268, 0, %v267
    %v270 = vsub.s32 32, %v269
    %v271 = vshll.u32 %v262, %v269
    %v272 = vshrl.u32 %v254, %v270
    %v273 = vor.u32 %v271, %v272
    %v274 = vsub.s32 4294967266, %v269
    %v275 = vadd.s32 %v274, 127
    %v276 = vshll.u32 %v275, 23
    %v277 = vor.u32 4788187, %v276
    %v278 = vand.u32 2147483647, %v277
    %v280 = vcvt.s32.f32 %v273
    %v281 = vmul.f32 %v280, %v278
    %v282 = vxor.u32 %v281, 2147483648
    %v283 = vsel %vm200, %v282, %v281
    %v284 = vsub.s32 4, %v260
    %v285 = vsel %vm200, %v284, %v260
    %v286 = vsel %vm199, %v79, %v283
    %v287 = vsel %vm199, 0, %v285
    %v288 = vcosq.f32.pop %v286
    %v289 = vsinq.f32.pop %v286
    %vm290 = vweird.f32 %v79
    %v291 = vadd.s32 %v287, 3
    %v292 = vand.u32 %v291, 3
    %vm293 = vcmp.lt.s32.totalorder %v292, 2
    %vm294 = vcmp.eq.s32.totalorder %v292, 0
    %v295 = vxor.u32 %v289, 2147483648
    %v296 = vsel %vm294, %v288, %v295
    %vm297 = vcmp.eq.s32.totalorder %v292, 2
    %v298 = vxor.u32 %v288, 2147483648
    %v299 = vsel %vm297, %v298, %v289
    %v300 = vsel %vm293, %v296, %v299
    %v301 = vsel %vm290, nan, %v300
    %v302 = vand.u32 2147483647, %v80
    %vm303 = vcmp.le.f32.partialorder %v302, 0.7853982
    %vm304 = vcmp.lt.s32.totalorder %v80, 0
    %v305 = vand.u32 %v80, 2139095040
    %v306 = vshrl.u32 %v305, 23
    %v307 = vsub.s32 %v306, 127
    %v308 = vand.u32 2147483647, %v80
    %v309 = vand.u32 %v308, 8388607
    %v310 = vor.u32 %v309, 8388608
    %v311 = vsub.s32 0, %v310
    %v312 = vadd.s32 %v307, 1
    %vm313 = vcmp.gt.s32.totalorder %v312, 0
    %v314 = vsel %vm313, %v312, 0
    %v315 = vshrl.u32 %v314, 5
    %v316 = vand.u32 %v314, 31
    %v317 = vsub.s32 32, %v316
    %v318 = vshrl.u32 683565275, %v317
    %v319 = vshll.u32 683565275, %v316
    %v320 = vshrl.u32 2475754826, %v317
    %v321 = vor.u32 %v319, %v320
    %v322 = vshll.u32 2475754826, %v316
    %v323 = vshrl.u32 2131351028, %v317
    %v324 = vor.u32 %v322, %v323
    %v325 = vshll.u32 2131351028, %v316
    %v326 = vshrl.u32 2102212464, %v317
    %v327 = vor.u32 %v325, %v326
    %v328 = vshll.u32 2102212464, %v316
    %v329 = vshrl.u32 920167782, %v317
    %v330 = vor.u32 %v328, %v329
    %v331 = vshll.u32 920167782, %v316
    %v332 = vshrl.u32 1326507024, %v317
    %v333 = vor.u32 %v331, %v332
    %vm334 = vcmp.lt.s32.totalorder %v315, 1
    %vm335 = vcmp.lt.s32.totalorder %v315, 2
    %vm336 = vcmp.lt.s32.totalorder %v315, 3
    %vm337 = vcmp.lt.s32.totalorder %v315, 4
    %v338 = vsel %vm334, %v318, %v321
    %v339 = vsel %vm337, %v327, 2102212464
    %v340 = vsel %vm336, %v324, %v339
    %v341 = vsel %vm335, %v338, %v340
    %v342 = vsel %vm334, %v321, %v324
    %v343 = vsel %vm337, %v330, 920167782
    %v344 = vsel %vm336, %v327, %v343
    %v345 = vsel %vm335, %v342, %v344
    %v346 = vsel %vm334, %v324, %v327
    %v347 = vsel %vm337, %v333, 1326507024
    %v348 = vsel %vm336, %v330, %v347
    %v349 = vsel %vm335, %v346, %v348
    %v350 = vshll.u32 %v310, 8
    %v351 = vmul.u32.u64.compose %v350, %v349
    %v352 = vextract.low.u32 %v351
    %v353 = vextract.high.u32 %v351
    %v354 = vmul.u32.u64.compose %v350, %v345
    %v355 = vextract.low.u32 %v354
    %v356 = vextract.high.u32 %v354
    %v357 = vmul.u32 %v350, %v341
    %v358 = vadd.s32 %v353, %v355
    %vm359 = vc.u32 %v353, %v355
    %v360 = vadd.s32 %v356, 1
    %v361 = vsel %vm359, %v360, %v356
    %v362 = vadd.s32 %v357, %v361
    %v363 = vadd.s32 %v362, 536870912
    %v364 = vshrl.u32 %v363, 30
    %v365 = vshll.u32 %v364, 30
    %v366 = vsub.s32 %v362, %v365
    %vm367 = vcmp.lt.s32.totalorder %v366, 0
    %v368 = vsub.s32 0, %v366
    %v369 = vsel %vm367, %v368, %v366
    %v370 = vclz %v369
    %v371 = vsub.s32 %v370, 2
    %vm372 = vcmp.gt.s32.totalorder 0, %v371
    %v373 = vsel %vm372, 0, %v371
    %v374 = vsub.s32 32, %v373
    %v375 = vshll.u32 %v366, %v373
    %v376 = vshrl.u32 %v358, %v374
    %v377 = vor.u32 %v375, %v376
    %v378 = vsub.s32 4294967266, %v373
    %v379 = vadd.s32 %v378, 127
    %v380 = vshll.u32 %v379, 23
    %v381 = vor.u32 4788187, %v380
    %v382 = vand.u32 2147483647, %v381
    %v384 = vcvt.s32.f32 %v377
    %v385 = vmul.f32 %v384, %v382
    %v386 = vxor.u32 %v385, 2147483648
    %v387 = vsel %vm304, %v386, %v385
    %v388 = vsub.s32 4, %v364
    %v389 = vsel %vm304, %v388, %v364
    %v390 = vsel %vm303, %v80, %v387
    %v391 = vsel %vm303, 0, %v389
    %v392 = vcosq.f32.pop %v390
    %v393 = vsinq.f32.pop %v390
    %vm394 = vweird.f32 %v80
    %v395 = vadd.s32 %v391, 3
    %v396 = vand.u32 %v395, 3
    %vm397 = vcmp.lt.s32.totalorder %v396, 2
    %vm398 = vcmp.eq.s32.totalorder %v396, 0
    %v399 = vxor.u32 %v393, 2147483648
    %v400 = vsel %vm398, %v392, %v399
    %vm401 = vcmp.eq.s32.totalorder %v396, 2
    %v402 = vxor.u32 %v392, 2147483648
    %v403 = vsel %vm401, %v402, %v393
    %v404 = vsel %vm397, %v400, %v403
    %v405 = vsel %vm394, nan, %v404
    %v406 = vand.u32 2147483647, %v81
    %vm407 = vcmp.le.f32.partialorder %v406, 0.7853982
    %vm408 = vcmp.lt.s32.totalorder %v81, 0
    %v409 = vand.u32 %v81, 2139095040
    %v410 = vshrl.u32 %v409, 23
    %v411 = vsub.s32 %v410, 127
    %v412 = vand.u32 2147483647, %v81
    %v413 = vand.u32 %v412, 8388607
    %v414 = vor.u32 %v413, 8388608
    %v415 = vsub.s32 0, %v414
    %v416 = vadd.s32 %v411, 1
    %vm417 = vcmp.gt.s32.totalorder %v416, 0
    %v418 = vsel %vm417, %v416, 0
    %v419 = vshrl.u32 %v418, 5
    %v420 = vand.u32 %v418, 31
    %v421 = vsub.s32 32, %v420
    %v422 = vshrl.u32 683565275, %v421
    %v423 = vshll.u32 683565275, %v420
    %v424 = vshrl.u32 2475754826, %v421
    %v425 = vor.u32 %v423, %v424
    %v426 = vshll.u32 2475754826, %v420
    %v427 = vshrl.u32 2131351028, %v421
    %v428 = vor.u32 %v426, %v427
    %v429 = vshll.u32 2131351028, %v420
    %v430 = vshrl.u32 2102212464, %v421
    %v431 = vor.u32 %v429, %v430
    %v432 = vshll.u32 2102212464, %v420
    %v433 = vshrl.u32 920167782, %v421
    %v434 = vor.u32 %v432, %v433
    %v435 = vshll.u32 920167782, %v420
    %v436 = vshrl.u32 1326507024, %v421
    %v437 = vor.u32 %v435, %v436
    %vm438 = vcmp.lt.s32.totalorder %v419, 1
    %vm439 = vcmp.lt.s32.totalorder %v419, 2
    %vm440 = vcmp.lt.s32.totalorder %v419, 3
    %vm441 = vcmp.lt.s32.totalorder %v419, 4
    %v442 = vsel %vm438, %v422, %v425
    %v443 = vsel %vm441, %v431, 2102212464
    %v444 = vsel %vm440, %v428, %v443
    %v445 = vsel %vm439, %v442, %v444
    %v446 = vsel %vm438, %v425, %v428
    %v447 = vsel %vm441, %v434, 920167782
    %v448 = vsel %vm440, %v431, %v447
    %v449 = vsel %vm439, %v446, %v448
    %v450 = vsel %vm438, %v428, %v431
    %v451 = vsel %vm441, %v437, 1326507024
    %v452 = vsel %vm440, %v434, %v451
    %v453 = vsel %vm439, %v450, %v452
    %v454 = vshll.u32 %v414, 8
    %v455 = vmul.u32.u64.compose %v454, %v453
    %v456 = vextract.low.u32 %v455
    %v457 = vextract.high.u32 %v455
    %v458 = vmul.u32.u64.compose %v454, %v449
    %v459 = vextract.low.u32 %v458
    %v460 = vextract.high.u32 %v458
    %v461 = vmul.u32 %v454, %v445
    %v462 = vadd.s32 %v457, %v459
    %vm463 = vc.u32 %v457, %v459
    %v464 = vadd.s32 %v460, 1
    %v465 = vsel %vm463, %v464, %v460
    %v466 = vadd.s32 %v461, %v465
    %v467 = vadd.s32 %v466, 536870912
    %v468 = vshrl.u32 %v467, 30
    %v469 = vshll.u32 %v468, 30
    %v470 = vsub.s32 %v466, %v469
    %vm471 = vcmp.lt.s32.totalorder %v470, 0
    %v472 = vsub.s32 0, %v470
    %v473 = vsel %vm471, %v472, %v470
    %v474 = vclz %v473
    %v475 = vsub.s32 %v474, 2
    %vm476 = vcmp.gt.s32.totalorder 0, %v475
    %v477 = vsel %vm476, 0, %v475
    %v478 = vsub.s32 32, %v477
    %v479 = vshll.u32 %v470, %v477
    %v480 = vshrl.u32 %v462, %v478
    %v481 = vor.u32 %v479, %v480
    %v482 = vsub.s32 4294967266, %v477
    %v483 = vadd.s32 %v482, 127
    %v484 = vshll.u32 %v483, 23
    %v485 = vor.u32 4788187, %v484
    %v486 = vand.u32 2147483647, %v485
    %v488 = vcvt.s32.f32 %v481
    %v489 = vmul.f32 %v488, %v486
    %v490 = vxor.u32 %v489, 2147483648
    %v491 = vsel %vm408, %v490, %v489
    %v492 = vsub.s32 4, %v468
    %v493 = vsel %vm408, %v492, %v468
    %v494 = vsel %vm407, %v81, %v491
    %v495 = vsel %vm407, 0, %v493
    %v496 = vcosq.f32.pop %v494
    %v497 = vsinq.f32.pop %v494
    %vm498 = vweird.f32 %v81
    %v499 = vadd.s32 %v495, 3
    %v500 = vand.u32 %v499, 3
    %vm501 = vcmp.lt.s32.totalorder %v500, 2
    %vm502 = vcmp.eq.s32.totalorder %v500, 0
    %v503 = vxor.u32 %v497, 2147483648
    %v504 = vsel %vm502, %v496, %v503
    %vm505 = vcmp.eq.s32.totalorder %v500, 2
    %v506 = vxor.u32 %v496, 2147483648
    %v507 = vsel %vm505, %v506, %v497
    %v508 = vsel %vm501, %v504, %v507
    %v509 = vsel %vm498, nan, %v508
    %v510 = vand.u32 2147483647, %v82
    %vm511 = vcmp.le.f32.partialorder %v510, 0.7853982
    %vm512 = vcmp.lt.s32.totalorder %v82, 0
    %v513 = vand.u32 %v82, 2139095040
    %v514 = vshrl.u32 %v513, 23
    %v515 = vsub.s32 %v514, 127
    %v516 = vand.u32 2147483647, %v82
    %v517 = vand.u32 %v516, 8388607
    %v518 = vor.u32 %v517, 8388608
    %v519 = vsub.s32 0, %v518
    %v520 = vadd.s32 %v515, 1
    %vm521 = vcmp.gt.s32.totalorder %v520, 0
    %v522 = vsel %vm521, %v520, 0
    %v523 = vshrl.u32 %v522, 5
    %v524 = vand.u32 %v522, 31
    %v525 = vsub.s32 32, %v524
    %v526 = vshrl.u32 683565275, %v525
    %v527 = vshll.u32 683565275, %v524
    %v528 = vshrl.u32 2475754826, %v525
    %v529 = vor.u32 %v527, %v528
    %v530 = vshll.u32 2475754826, %v524
    %v531 = vshrl.u32 2131351028, %v525
    %v532 = vor.u32 %v530, %v531
    %v533 = vshll.u32 2131351028, %v524
    %v534 = vshrl.u32 2102212464, %v525
    %v535 = vor.u32 %v533, %v534
    %v536 = vshll.u32 2102212464, %v524
    %v537 = vshrl.u32 920167782, %v525
    %v538 = vor.u32 %v536, %v537
    %v539 = vshll.u32 920167782, %v524
    %v540 = vshrl.u32 1326507024, %v525
    %v541 = vor.u32 %v539, %v540
    %vm542 = vcmp.lt.s32.totalorder %v523, 1
    %vm543 = vcmp.lt.s32.totalorder %v523, 2
    %vm544 = vcmp.lt.s32.totalorder %v523, 3
    %vm545 = vcmp.lt.s32.totalorder %v523, 4
    %v546 = vsel %vm542, %v526, %v529
    %v547 = vsel %vm545, %v535, 2102212464
    %v548 = vsel %vm544, %v532, %v547
    %v549 = vsel %vm543, %v546, %v548
    %v550 = vsel %vm542, %v529, %v532
    %v551 = vsel %vm545, %v538, 920167782
    %v552 = vsel %vm544, %v535, %v551
    %v553 = vsel %vm543, %v550, %v552
    %v554 = vsel %vm542, %v532, %v535
    %v555 = vsel %vm545, %v541, 1326507024
    %v556 = vsel %vm544, %v538, %v555
    %v557 = vsel %vm543, %v554, %v556
    %v558 = vshll.u32 %v518, 8
    %v559 = vmul.u32.u64.compose %v558, %v557
    %v560 = vextract.low.u32 %v559
    %v561 = vextract.high.u32 %v559
    %v562 = vmul.u32.u64.compose %v558, %v553
    %v563 = vextract.low.u32 %v562
    %v564 = vextract.high.u32 %v562
    %v565 = vmul.u32 %v558, %v549
    %v566 = vadd.s32 %v561, %v563
    %vm567 = vc.u32 %v561, %v563
    %v568 = vadd.s32 %v564, 1
    %v569 = vsel %vm567, %v568, %v564
    %v570 = vadd.s32 %v565, %v569
    %v571 = vadd.s32 %v570, 536870912
    %v572 = vshrl.u32 %v571, 30
    %v573 = vshll.u32 %v572, 30
    %v574 = vsub.s32 %v570, %v573
    %vm575 = vcmp.lt.s32.totalorder %v574, 0
    %v576 = vsub.s32 0, %v574
    %v577 = vsel %vm575, %v576, %v574
    %v578 = vclz %v577
    %v579 = vsub.s32 %v578, 2
    %vm580 = vcmp.gt.s32.totalorder 0, %v579
    %v581 = vsel %vm580, 0, %v579
    %v582 = vsub.s32 32, %v581
    %v583 = vshll.u32 %v574, %v581
    %v584 = vshrl.u32 %v566, %v582
    %v585 = vor.u32 %v583, %v584
    %v586 = vsub.s32 4294967266, %v581
    %v587 = vadd.s32 %v586, 127
    %v588 = vshll.u32 %v587, 23
    %v589 = vor.u32 4788187, %v588
    %v590 = vand.u32 2147483647, %v589
    %v592 = vcvt.s32.f32 %v585
    %v593 = vmul.f32 %v592, %v590
    %v594 = vxor.u32 %v593, 2147483648
    %v595 = vsel %vm512, %v594, %v593
    %v596 = vsub.s32 4, %v572
    %v597 = vsel %vm512, %v596, %v572
    %v598 = vsel %vm511, %v82, %v595
    %v599 = vsel %vm511, 0, %v597
    %v600 = vcosq.f32.pop %v598
    %v601 = vsinq.f32.pop %v598
    %vm602 = vweird.f32 %v82
    %v603 = vadd.s32 %v599, 3
    %v604 = vand.u32 %v603, 3
    %vm605 = vcmp.lt.s32.totalorder %v604, 2
    %vm606 = vcmp.eq.s32.totalorder %v604, 0
    %v607 = vxor.u32 %v601, 2147483648
    %v608 = vsel %vm606, %v600, %v607
    %vm609 = vcmp.eq.s32.totalorder %v604, 2
    %v610 = vxor.u32 %v600, 2147483648
    %v611 = vsel %vm609, %v610, %v601
    %v612 = vsel %vm605, %v608, %v611
    %v613 = vsel %vm602, nan, %v612
    %v614 = vand.u32 2147483647, %v83
    %vm615 = vcmp.le.f32.partialorder %v614, 0.7853982
    %vm616 = vcmp.lt.s32.totalorder %v83, 0
    %v617 = vand.u32 %v83, 2139095040
    %v618 = vshrl.u32 %v617, 23
    %v619 = vsub.s32 %v618, 127
    %v620 = vand.u32 2147483647, %v83
    %v621 = vand.u32 %v620, 8388607
    %v622 = vor.u32 %v621, 8388608
    %v623 = vsub.s32 0, %v622
    %v624 = vadd.s32 %v619, 1
    %vm625 = vcmp.gt.s32.totalorder %v624, 0
    %v626 = vsel %vm625, %v624, 0
    %v627 = vshrl.u32 %v626, 5
    %v628 = vand.u32 %v626, 31
    %v629 = vsub.s32 32, %v628
    %v630 = vshrl.u32 683565275, %v629
    %v631 = vshll.u32 683565275, %v628
    %v632 = vshrl.u32 2475754826, %v629
    %v633 = vor.u32 %v631, %v632
    %v634 = vshll.u32 2475754826, %v628
    %v635 = vshrl.u32 2131351028, %v629
    %v636 = vor.u32 %v634, %v635
    %v637 = vshll.u32 2131351028, %v628
    %v638 = vshrl.u32 2102212464, %v629
    %v639 = vor.u32 %v637, %v638
    %v640 = vshll.u32 2102212464, %v628
    %v641 = vshrl.u32 920167782, %v629
    %v642 = vor.u32 %v640, %v641
    %v643 = vshll.u32 920167782, %v628
    %v644 = vshrl.u32 1326507024, %v629
    %v645 = vor.u32 %v643, %v644
    %vm646 = vcmp.lt.s32.totalorder %v627, 1
    %vm647 = vcmp.lt.s32.totalorder %v627, 2
    %vm648 = vcmp.lt.s32.totalorder %v627, 3
    %vm649 = vcmp.lt.s32.totalorder %v627, 4
    %v650 = vsel %vm646, %v630, %v633
    %v651 = vsel %vm649, %v639, 2102212464
    %v652 = vsel %vm648, %v636, %v651
    %v653 = vsel %vm647, %v650, %v652
    %v654 = vsel %vm646, %v633, %v636
    %v655 = vsel %vm649, %v642, 920167782
    %v656 = vsel %vm648, %v639, %v655
    %v657 = vsel %vm647, %v654, %v656
    %v658 = vsel %vm646, %v636, %v639
    %v659 = vsel %vm649, %v645, 1326507024
    %v660 = vsel %vm648, %v642, %v659
    %v661 = vsel %vm647, %v658, %v660
    %v662 = vshll.u32 %v622, 8
    %v663 = vmul.u32.u64.compose %v662, %v661
    %v664 = vextract.low.u32 %v663
    %v665 = vextract.high.u32 %v663
    %v666 = vmul.u32.u64.compose %v662, %v657
    %v667 = vextract.low.u32 %v666
    %v668 = vextract.high.u32 %v666
    %v669 = vmul.u32 %v662, %v653
    %v670 = vadd.s32 %v665, %v667
    %vm671 = vc.u32 %v665, %v667
    %v672 = vadd.s32 %v668, 1
    %v673 = vsel %vm671, %v672, %v668
    %v674 = vadd.s32 %v669, %v673
    %v675 = vadd.s32 %v674, 536870912
    %v676 = vshrl.u32 %v675, 30
    %v677 = vshll.u32 %v676, 30
    %v678 = vsub.s32 %v674, %v677
    %vm679 = vcmp.lt.s32.totalorder %v678, 0
    %v680 = vsub.s32 0, %v678
    %v681 = vsel %vm679, %v680, %v678
    %v682 = vclz %v681
    %v683 = vsub.s32 %v682, 2
    %vm684 = vcmp.gt.s32.totalorder 0, %v683
    %v685 = vsel %vm684, 0, %v683
    %v686 = vsub.s32 32, %v685
    %v687 = vshll.u32 %v678, %v685
    %v688 = vshrl.u32 %v670, %v686
    %v689 = vor.u32 %v687, %v688
    %v690 = vsub.s32 4294967266, %v685
    %v691 = vadd.s32 %v690, 127
    %v692 = vshll.u32 %v691, 23
    %v693 = vor.u32 4788187, %v692
    %v694 = vand.u32 2147483647, %v693
    %v696 = vcvt.s32.f32 %v689
    %v697 = vmul.f32 %v696, %v694
    %v698 = vxor.u32 %v697, 2147483648
    %v699 = vsel %vm616, %v698, %v697
    %v700 = vsub.s32 4, %v676
    %v701 = vsel %vm616, %v700, %v676
    %v702 = vsel %vm615, %v83, %v699
    %v703 = vsel %vm615, 0, %v701
    %v704 = vcosq.f32.pop %v702
    %v705 = vsinq.f32.pop %v702
    %vm706 = vweird.f32 %v83
    %v707 = vadd.s32 %v703, 3
    %v708 = vand.u32 %v707, 3
    %vm709 = vcmp.lt.s32.totalorder %v708, 2
    %vm710 = vcmp.eq.s32.totalorder %v708, 0
    %v711 = vxor.u32 %v705, 2147483648
    %v712 = vsel %vm710, %v704, %v711
    %vm713 = vcmp.eq.s32.totalorder %v708, 2
    %v714 = vxor.u32 %v704, 2147483648
    %v715 = vsel %vm713, %v714, %v705
    %v716 = vsel %vm709, %v712, %v715
    %v717 = vsel %vm706, nan, %v716
    %v718 = vand.u32 2147483647, %v84
    %vm719 = vcmp.le.f32.partialorder %v718, 0.7853982
    %vm720 = vcmp.lt.s32.totalorder %v84, 0
    %v721 = vand.u32 %v84, 2139095040
    %v722 = vshrl.u32 %v721, 23
    %v723 = vsub.s32 %v722, 127
    %v724 = vand.u32 2147483647, %v84
    %v725 = vand.u32 %v724, 8388607
    %v726 = vor.u32 %v725, 8388608
    %v727 = vsub.s32 0, %v726
    %v728 = vadd.s32 %v723, 1
    %vm729 = vcmp.gt.s32.totalorder %v728, 0
    %v730 = vsel %vm729, %v728, 0
    %v731 = vshrl.u32 %v730, 5
    %v732 = vand.u32 %v730, 31
    %v733 = vsub.s32 32, %v732
    %v734 = vshrl.u32 683565275, %v733
    %v735 = vshll.u32 683565275, %v732
    %v736 = vshrl.u32 2475754826, %v733
    %v737 = vor.u32 %v735, %v736
    %v738 = vshll.u32 2475754826, %v732
    %v739 = vshrl.u32 2131351028, %v733
    %v740 = vor.u32 %v738, %v739
    %v741 = vshll.u32 2131351028, %v732
    %v742 = vshrl.u32 2102212464, %v733
    %v743 = vor.u32 %v741, %v742
    %v744 = vshll.u32 2102212464, %v732
    %v745 = vshrl.u32 920167782, %v733
    %v746 = vor.u32 %v744, %v745
    %v747 = vshll.u32 920167782, %v732
    %v748 = vshrl.u32 1326507024, %v733
    %v749 = vor.u32 %v747, %v748
    %vm750 = vcmp.lt.s32.totalorder %v731, 1
    %vm751 = vcmp.lt.s32.totalorder %v731, 2
    %vm752 = vcmp.lt.s32.totalorder %v731, 3
    %vm753 = vcmp.lt.s32.totalorder %v731, 4
    %v754 = vsel %vm750, %v734, %v737
    %v755 = vsel %vm753, %v743, 2102212464
    %v756 = vsel %vm752, %v740, %v755
    %v757 = vsel %vm751, %v754, %v756
    %v758 = vsel %vm750, %v737, %v740
    %v759 = vsel %vm753, %v746, 920167782
    %v760 = vsel %vm752, %v743, %v759
    %v761 = vsel %vm751, %v758, %v760
    %v762 = vsel %vm750, %v740, %v743
    %v763 = vsel %vm753, %v749, 1326507024
    %v764 = vsel %vm752, %v746, %v763
    %v765 = vsel %vm751, %v762, %v764
    %v766 = vshll.u32 %v726, 8
    %v767 = vmul.u32.u64.compose %v766, %v765
    %v768 = vextract.low.u32 %v767
    %v769 = vextract.high.u32 %v767
    %v770 = vmul.u32.u64.compose %v766, %v761
    %v771 = vextract.low.u32 %v770
    %v772 = vextract.high.u32 %v770
    %v773 = vmul.u32 %v766, %v757
    %v774 = vadd.s32 %v769, %v771
    %vm775 = vc.u32 %v769, %v771
    %v776 = vadd.s32 %v772, 1
    %v777 = vsel %vm775, %v776, %v772
    %v778 = vadd.s32 %v773, %v777
    %v779 = vadd.s32 %v778, 536870912
    %v780 = vshrl.u32 %v779, 30
    %v781 = vshll.u32 %v780, 30
    %v782 = vsub.s32 %v778, %v781
    %vm783 = vcmp.lt.s32.totalorder %v782, 0
    %v784 = vsub.s32 0, %v782
    %v785 = vsel %vm783, %v784, %v782
    %v786 = vclz %v785
    %v787 = vsub.s32 %v786, 2
    %vm788 = vcmp.gt.s32.totalorder 0, %v787
    %v789 = vsel %vm788, 0, %v787
    %v790 = vsub.s32 32, %v789
    %v791 = vshll.u32 %v782, %v789
    %v792 = vshrl.u32 %v774, %v790
    %v793 = vor.u32 %v791, %v792
    %v794 = vsub.s32 4294967266, %v789
    %v795 = vadd.s32 %v794, 127
    %v796 = vshll.u32 %v795, 23
    %v797 = vor.u32 4788187, %v796
    %v798 = vand.u32 2147483647, %v797
    %v800 = vcvt.s32.f32 %v793
    %v801 = vmul.f32 %v800, %v798
    %v802 = vxor.u32 %v801, 2147483648
    %v803 = vsel %vm720, %v802, %v801
    %v804 = vsub.s32 4, %v780
    %v805 = vsel %vm720, %v804, %v780
    %v806 = vsel %vm719, %v84, %v803
    %v807 = vsel %vm719, 0, %v805
    %v808 = vcosq.f32.pop %v806
    %v809 = vsinq.f32.pop %v806
    %vm810 = vweird.f32 %v84
    %v811 = vadd.s32 %v807, 3
    %v812 = vand.u32 %v811, 3
    %vm813 = vcmp.lt.s32.totalorder %v812, 2
    %vm814 = vcmp.eq.s32.totalorder %v812, 0
    %v815 = vxor.u32 %v809, 2147483648
    %v816 = vsel %vm814, %v808, %v815
    %vm817 = vcmp.eq.s32.totalorder %v812, 2
    %v818 = vxor.u32 %v808, 2147483648
    %v819 = vsel %vm817, %v818, %v809
    %v820 = vsel %vm813, %v816, %v819
    %v821 = vsel %vm810, nan, %v820
    %v822 = vand.u32 2147483647, %v85
    %vm823 = vcmp.le.f32.partialorder %v822, 0.7853982
    %vm824 = vcmp.lt.s32.totalorder %v85, 0
    %v825 = vand.u32 %v85, 2139095040
    %v826 = vshrl.u32 %v825, 23
    %v827 = vsub.s32 %v826, 127
    %v828 = vand.u32 2147483647, %v85
    %v829 = vand.u32 %v828, 8388607
    %v830 = vor.u32 %v829, 8388608
    %v831 = vsub.s32 0, %v830
    %v832 = vadd.s32 %v827, 1
    %vm833 = vcmp.gt.s32.totalorder %v832, 0
    %v834 = vsel %vm833, %v832, 0
    %v835 = vshrl.u32 %v834, 5
    %v836 = vand.u32 %v834, 31
    %v837 = vsub.s32 32, %v836
    %v838 = vshrl.u32 683565275, %v837
    %v839 = vshll.u32 683565275, %v836
    %v840 = vshrl.u32 2475754826, %v837
    %v841 = vor.u32 %v839, %v840
    %v842 = vshll.u32 2475754826, %v836
    %v843 = vshrl.u32 2131351028, %v837
    %v844 = vor.u32 %v842, %v843
    %v845 = vshll.u32 2131351028, %v836
    %v846 = vshrl.u32 2102212464, %v837
    %v847 = vor.u32 %v845, %v846
    %v848 = vshll.u32 2102212464, %v836
    %v849 = vshrl.u32 920167782, %v837
    %v850 = vor.u32 %v848, %v849
    %v851 = vshll.u32 920167782, %v836
    %v852 = vshrl.u32 1326507024, %v837
    %v853 = vor.u32 %v851, %v852
    %vm854 = vcmp.lt.s32.totalorder %v835, 1
    %vm855 = vcmp.lt.s32.totalorder %v835, 2
    %vm856 = vcmp.lt.s32.totalorder %v835, 3
    %vm857 = vcmp.lt.s32.totalorder %v835, 4
    %v858 = vsel %vm854, %v838, %v841
    %v859 = vsel %vm857, %v847, 2102212464
    %v860 = vsel %vm856, %v844, %v859
    %v861 = vsel %vm855, %v858, %v860
    %v862 = vsel %vm854, %v841, %v844
    %v863 = vsel %vm857, %v850, 920167782
    %v864 = vsel %vm856, %v847, %v863
    %v865 = vsel %vm855, %v862, %v864
    %v866 = vsel %vm854, %v844, %v847
    %v867 = vsel %vm857, %v853, 1326507024
    %v868 = vsel %vm856, %v850, %v867
    %v869 = vsel %vm855, %v866, %v868
    %v870 = vshll.u32 %v830, 8
    %v871 = vmul.u32.u64.compose %v870, %v869
    %v872 = vextract.low.u32 %v871
    %v873 = vextract.high.u32 %v871
    %v874 = vmul.u32.u64.compose %v870, %v865
    %v875 = vextract.low.u32 %v874
    %v876 = vextract.high.u32 %v874
    %v877 = vmul.u32 %v870, %v861
    %v878 = vadd.s32 %v873, %v875
    %vm879 = vc.u32 %v873, %v875
    %v880 = vadd.s32 %v876, 1
    %v881 = vsel %vm879, %v880, %v876
    %v882 = vadd.s32 %v877, %v881
    %v883 = vadd.s32 %v882, 536870912
    %v884 = vshrl.u32 %v883, 30
    %v885 = vshll.u32 %v884, 30
    %v886 = vsub.s32 %v882, %v885
    %vm887 = vcmp.lt.s32.totalorder %v886, 0
    %v888 = vsub.s32 0, %v886
    %v889 = vsel %vm887, %v888, %v886
    %v890 = vclz %v889
    %v891 = vsub.s32 %v890, 2
    %vm892 = vcmp.gt.s32.totalorder 0, %v891
    %v893 = vsel %vm892, 0, %v891
    %v894 = vsub.s32 32, %v893
    %v895 = vshll.u32 %v886, %v893
    %v896 = vshrl.u32 %v878, %v894
    %v897 = vor.u32 %v895, %v896
    %v898 = vsub.s32 4294967266, %v893
    %v899 = vadd.s32 %v898, 127
    %v900 = vshll.u32 %v899, 23
    %v901 = vor.u32 4788187, %v900
    %v902 = vand.u32 2147483647, %v901
    %v904 = vcvt.s32.f32 %v897
    %v905 = vmul.f32 %v904, %v902
    %v906 = vxor.u32 %v905, 2147483648
    %v907 = vsel %vm824, %v906, %v905
    %v908 = vsub.s32 4, %v884
    %v909 = vsel %vm824, %v908, %v884
    %v910 = vsel %vm823, %v85, %v907
    %v911 = vsel %vm823, 0, %v909
    %v912 = vcosq.f32.pop %v910
    %v913 = vsinq.f32.pop %v910
    %vm914 = vweird.f32 %v85
    %v915 = vadd.s32 %v911, 3
    %v916 = vand.u32 %v915, 3
    %vm917 = vcmp.lt.s32.totalorder %v916, 2
    %vm918 = vcmp.eq.s32.totalorder %v916, 0
    %v919 = vxor.u32 %v913, 2147483648
    %v920 = vsel %vm918, %v912, %v919
    %vm921 = vcmp.eq.s32.totalorder %v916, 2
    %v922 = vxor.u32 %v912, 2147483648
    %v923 = vsel %vm921, %v922, %v913
    %v924 = vsel %vm917, %v920, %v923
    %v925 = vsel %vm914, nan, %v924
    %v926 = vand.u32 2147483647, %v86
    %vm927 = vcmp.le.f32.partialorder %v926, 0.7853982
    %vm928 = vcmp.lt.s32.totalorder %v86, 0
    %v929 = vand.u32 %v86, 2139095040
    %v930 = vshrl.u32 %v929, 23
    %v931 = vsub.s32 %v930, 127
    %v932 = vand.u32 2147483647, %v86
    %v933 = vand.u32 %v932, 8388607
    %v934 = vor.u32 %v933, 8388608
    %v935 = vsub.s32 0, %v934
    %v936 = vadd.s32 %v931, 1
    %vm937 = vcmp.gt.s32.totalorder %v936, 0
    %v938 = vsel %vm937, %v936, 0
    %v939 = vshrl.u32 %v938, 5
    %v940 = vand.u32 %v938, 31
    %v941 = vsub.s32 32, %v940
    %v942 = vshrl.u32 683565275, %v941
    %v943 = vshll.u32 683565275, %v940
    %v944 = vshrl.u32 2475754826, %v941
    %v945 = vor.u32 %v943, %v944
    %v946 = vshll.u32 2475754826, %v940
    %v947 = vshrl.u32 2131351028, %v941
    %v948 = vor.u32 %v946, %v947
    %v949 = vshll.u32 2131351028, %v940
    %v950 = vshrl.u32 2102212464, %v941
    %v951 = vor.u32 %v949, %v950
    %v952 = vshll.u32 2102212464, %v940
    %v953 = vshrl.u32 920167782, %v941
    %v954 = vor.u32 %v952, %v953
    %v955 = vshll.u32 920167782, %v940
    %v956 = vshrl.u32 1326507024, %v941
    %v957 = vor.u32 %v955, %v956
    %vm958 = vcmp.lt.s32.totalorder %v939, 1
    %vm959 = vcmp.lt.s32.totalorder %v939, 2
    %vm960 = vcmp.lt.s32.totalorder %v939, 3
    %vm961 = vcmp.lt.s32.totalorder %v939, 4
    %v962 = vsel %vm958, %v942, %v945
    %v963 = vsel %vm961, %v951, 2102212464
    %v964 = vsel %vm960, %v948, %v963
    %v965 = vsel %vm959, %v962, %v964
    %v966 = vsel %vm958, %v945, %v948
    %v967 = vsel %vm961, %v954, 920167782
    %v968 = vsel %vm960, %v951, %v967
    %v969 = vsel %vm959, %v966, %v968
    %v970 = vsel %vm958, %v948, %v951
    %v971 = vsel %vm961, %v957, 1326507024
    %v972 = vsel %vm960, %v954, %v971
    %v973 = vsel %vm959, %v970, %v972
    %v974 = vshll.u32 %v934, 8
    %v975 = vmul.u32.u64.compose %v974, %v973
    %v976 = vextract.low.u32 %v975
    %v977 = vextract.high.u32 %v975
    %v978 = vmul.u32.u64.compose %v974, %v969
    %v979 = vextract.low.u32 %v978
    %v980 = vextract.high.u32 %v978
    %v981 = vmul.u32 %v974, %v965
    %v982 = vadd.s32 %v977, %v979
    %vm983 = vc.u32 %v977, %v979
    %v984 = vadd.s32 %v980, 1
    %v985 = vsel %vm983, %v984, %v980
    %v986 = vadd.s32 %v981, %v985
    %v987 = vadd.s32 %v986, 536870912
    %v988 = vshrl.u32 %v987, 30
    %v989 = vshll.u32 %v988, 30
    %v990 = vsub.s32 %v986, %v989
    %vm991 = vcmp.lt.s32.totalorder %v990, 0
    %v992 = vsub.s32 0, %v990
    %v993 = vsel %vm991, %v992, %v990
    %v994 = vclz %v993
    %v995 = vsub.s32 %v994, 2
    %vm996 = vcmp.gt.s32.totalorder 0, %v995
    %v997 = vsel %vm996, 0, %v995
    %v998 = vsub.s32 32, %v997
    %v999 = vshll.u32 %v990, %v997
    %v1000 = vshrl.u32 %v982, %v998
    %v1001 = vor.u32 %v999, %v1000
    %v1002 = vsub.s32 4294967266, %v997
    %v1003 = vadd.s32 %v1002, 127
    %v1004 = vshll.u32 %v1003, 23
    %v1005 = vor.u32 4788187, %v1004
    %v1006 = vand.u32 2147483647, %v1005
    %v1008 = vcvt.s32.f32 %v1001
    %v1009 = vmul.f32 %v1008, %v1006
    %v1010 = vxor.u32 %v1009, 2147483648
    %v1011 = vsel %vm928, %v1010, %v1009
    %v1012 = vsub.s32 4, %v988
    %v1013 = vsel %vm928, %v1012, %v988
    %v1014 = vsel %vm927, %v86, %v1011
    %v1015 = vsel %vm927, 0, %v1013
    %v1016 = vcosq.f32.pop %v1014
    %v1017 = vsinq.f32.pop %v1014
    %vm1018 = vweird.f32 %v86
    %v1019 = vadd.s32 %v1015, 3
    %v1020 = vand.u32 %v1019, 3
    %vm1021 = vcmp.lt.s32.totalorder %v1020, 2
    %vm1022 = vcmp.eq.s32.totalorder %v1020, 0
    %v1023 = vxor.u32 %v1017, 2147483648
    %v1024 = vsel %vm1022, %v1016, %v1023
    %vm1025 = vcmp.eq.s32.totalorder %v1020, 2
    %v1026 = vxor.u32 %v1016, 2147483648
    %v1027 = vsel %vm1025, %v1026, %v1017
    %v1028 = vsel %vm1021, %v1024, %v1027
    %v1029 = vsel %vm1018, nan, %v1028
    %v1030 = vand.u32 2147483647, %v87
    %vm1031 = vcmp.le.f32.partialorder %v1030, 0.7853982
    %vm1032 = vcmp.lt.s32.totalorder %v87, 0
    %v1033 = vand.u32 %v87, 2139095040
    %v1034 = vshrl.u32 %v1033, 23
    %v1035 = vsub.s32 %v1034, 127
    %v1036 = vand.u32 2147483647, %v87
    %v1037 = vand.u32 %v1036, 8388607
    %v1038 = vor.u32 %v1037, 8388608
    %v1039 = vsub.s32 0, %v1038
    %v1040 = vadd.s32 %v1035, 1
    %vm1041 = vcmp.gt.s32.totalorder %v1040, 0
    %v1042 = vsel %vm1041, %v1040, 0
    %v1043 = vshrl.u32 %v1042, 5
    %v1044 = vand.u32 %v1042, 31
    %v1045 = vsub.s32 32, %v1044
    %v1046 = vshrl.u32 683565275, %v1045
    %v1047 = vshll.u32 683565275, %v1044
    %v1048 = vshrl.u32 2475754826, %v1045
    %v1049 = vor.u32 %v1047, %v1048
    %v1050 = vshll.u32 2475754826, %v1044
    %v1051 = vshrl.u32 2131351028, %v1045
    %v1052 = vor.u32 %v1050, %v1051
    %v1053 = vshll.u32 2131351028, %v1044
    %v1054 = vshrl.u32 2102212464, %v1045
    %v1055 = vor.u32 %v1053, %v1054
    %v1056 = vshll.u32 2102212464, %v1044
    %v1057 = vshrl.u32 920167782, %v1045
    %v1058 = vor.u32 %v1056, %v1057
    %v1059 = vshll.u32 920167782, %v1044
    %v1060 = vshrl.u32 1326507024, %v1045
    %v1061 = vor.u32 %v1059, %v1060
    %vm1062 = vcmp.lt.s32.totalorder %v1043, 1
    %vm1063 = vcmp.lt.s32.totalorder %v1043, 2
    %vm1064 = vcmp.lt.s32.totalorder %v1043, 3
    %vm1065 = vcmp.lt.s32.totalorder %v1043, 4
    %v1066 = vsel %vm1062, %v1046, %v1049
    %v1067 = vsel %vm1065, %v1055, 2102212464
    %v1068 = vsel %vm1064, %v1052, %v1067
    %v1069 = vsel %vm1063, %v1066, %v1068
    %v1070 = vsel %vm1062, %v1049, %v1052
    %v1071 = vsel %vm1065, %v1058, 920167782
    %v1072 = vsel %vm1064, %v1055, %v1071
    %v1073 = vsel %vm1063, %v1070, %v1072
    %v1074 = vsel %vm1062, %v1052, %v1055
    %v1075 = vsel %vm1065, %v1061, 1326507024
    %v1076 = vsel %vm1064, %v1058, %v1075
    %v1077 = vsel %vm1063, %v1074, %v1076
    %v1078 = vshll.u32 %v1038, 8
    %v1079 = vmul.u32.u64.compose %v1078, %v1077
    %v1080 = vextract.low.u32 %v1079
    %v1081 = vextract.high.u32 %v1079
    %v1082 = vmul.u32.u64.compose %v1078, %v1073
    %v1083 = vextract.low.u32 %v1082
    %v1084 = vextract.high.u32 %v1082
    %v1085 = vmul.u32 %v1078, %v1069
    %v1086 = vadd.s32 %v1081, %v1083
    %vm1087 = vc.u32 %v1081, %v1083
    %v1088 = vadd.s32 %v1084, 1
    %v1089 = vsel %vm1087, %v1088, %v1084
    %v1090 = vadd.s32 %v1085, %v1089
    %v1091 = vadd.s32 %v1090, 536870912
    %v1092 = vshrl.u32 %v1091, 30
    %v1093 = vshll.u32 %v1092, 30
    %v1094 = vsub.s32 %v1090, %v1093
    %vm1095 = vcmp.lt.s32.totalorder %v1094, 0
    %v1096 = vsub.s32 0, %v1094
    %v1097 = vsel %vm1095, %v1096, %v1094
    %v1098 = vclz %v1097
    %v1099 = vsub.s32 %v1098, 2
    %vm1100 = vcmp.gt.s32.totalorder 0, %v1099
    %v1101 = vsel %vm1100, 0, %v1099
    %v1102 = vsub.s32 32, %v1101
    %v1103 = vshll.u32 %v1094, %v1101
    %v1104 = vshrl.u32 %v1086, %v1102
    %v1105 = vor.u32 %v1103, %v1104
    %v1106 = vsub.s32 4294967266, %v1101
    %v1107 = vadd.s32 %v1106, 127
    %v1108 = vshll.u32 %v1107, 23
    %v1109 = vor.u32 4788187, %v1108
    %v1110 = vand.u32 2147483647, %v1109
    %v1112 = vcvt.s32.f32 %v1105
    %v1113 = vmul.f32 %v1112, %v1110
    %v1114 = vxor.u32 %v1113, 2147483648
    %v1115 = vsel %vm1032, %v1114, %v1113
    %v1116 = vsub.s32 4, %v1092
    %v1117 = vsel %vm1032, %v1116, %v1092
    %v1118 = vsel %vm1031, %v87, %v1115
    %v1119 = vsel %vm1031, 0, %v1117
    %v1120 = vcosq.f32.pop %v1118
    %v1121 = vsinq.f32.pop %v1118
    %vm1122 = vweird.f32 %v87
    %v1123 = vadd.s32 %v1119, 3
    %v1124 = vand.u32 %v1123, 3
    %vm1125 = vcmp.lt.s32.totalorder %v1124, 2
    %vm1126 = vcmp.eq.s32.totalorder %v1124, 0
    %v1127 = vxor.u32 %v1121, 2147483648
    %v1128 = vsel %vm1126, %v1120, %v1127
    %vm1129 = vcmp.eq.s32.totalorder %v1124, 2
    %v1130 = vxor.u32 %v1120, 2147483648
    %v1131 = vsel %vm1129, %v1130, %v1121
    %v1132 = vsel %vm1125, %v1128, %v1131
    %v1133 = vsel %vm1122, nan, %v1132
    %v1134 = vand.u32 2147483647, %v88
    %vm1135 = vcmp.le.f32.partialorder %v1134, 0.7853982
    %vm1136 = vcmp.lt.s32.totalorder %v88, 0
    %v1137 = vand.u32 %v88, 2139095040
    %v1138 = vshrl.u32 %v1137, 23
    %v1139 = vsub.s32 %v1138, 127
    %v1140 = vand.u32 2147483647, %v88
    %v1141 = vand.u32 %v1140, 8388607
    %v1142 = vor.u32 %v1141, 8388608
    %v1143 = vsub.s32 0, %v1142
    %v1144 = vadd.s32 %v1139, 1
    %vm1145 = vcmp.gt.s32.totalorder %v1144, 0
    %v1146 = vsel %vm1145, %v1144, 0
    %v1147 = vshrl.u32 %v1146, 5
    %v1148 = vand.u32 %v1146, 31
    %v1149 = vsub.s32 32, %v1148
    %v1150 = vshrl.u32 683565275, %v1149
    %v1151 = vshll.u32 683565275, %v1148
    %v1152 = vshrl.u32 2475754826, %v1149
    %v1153 = vor.u32 %v1151, %v1152
    %v1154 = vshll.u32 2475754826, %v1148
    %v1155 = vshrl.u32 2131351028, %v1149
    %v1156 = vor.u32 %v1154, %v1155
    %v1157 = vshll.u32 2131351028, %v1148
    %v1158 = vshrl.u32 2102212464, %v1149
    %v1159 = vor.u32 %v1157, %v1158
    %v1160 = vshll.u32 2102212464, %v1148
    %v1161 = vshrl.u32 920167782, %v1149
    %v1162 = vor.u32 %v1160, %v1161
    %v1163 = vshll.u32 920167782, %v1148
    %v1164 = vshrl.u32 1326507024, %v1149
    %v1165 = vor.u32 %v1163, %v1164
    %vm1166 = vcmp.lt.s32.totalorder %v1147, 1
    %vm1167 = vcmp.lt.s32.totalorder %v1147, 2
    %vm1168 = vcmp.lt.s32.totalorder %v1147, 3
    %vm1169 = vcmp.lt.s32.totalorder %v1147, 4
    %v1170 = vsel %vm1166, %v1150, %v1153
    %v1171 = vsel %vm1169, %v1159, 2102212464
    %v1172 = vsel %vm1168, %v1156, %v1171
    %v1173 = vsel %vm1167, %v1170, %v1172
    %v1174 = vsel %vm1166, %v1153, %v1156
    %v1175 = vsel %vm1169, %v1162, 920167782
    %v1176 = vsel %vm1168, %v1159, %v1175
    %v1177 = vsel %vm1167, %v1174, %v1176
    %v1178 = vsel %vm1166, %v1156, %v1159
    %v1179 = vsel %vm1169, %v1165, 1326507024
    %v1180 = vsel %vm1168, %v1162, %v1179
    %v1181 = vsel %vm1167, %v1178, %v1180
    %v1182 = vshll.u32 %v1142, 8
    %v1183 = vmul.u32.u64.compose %v1182, %v1181
    %v1184 = vextract.low.u32 %v1183
    %v1185 = vextract.high.u32 %v1183
    %v1186 = vmul.u32.u64.compose %v1182, %v1177
    %v1187 = vextract.low.u32 %v1186
    %v1188 = vextract.high.u32 %v1186
    %v1189 = vmul.u32 %v1182, %v1173
    %v1190 = vadd.s32 %v1185, %v1187
    %vm1191 = vc.u32 %v1185, %v1187
    %v1192 = vadd.s32 %v1188, 1
    %v1193 = vsel %vm1191, %v1192, %v1188
    %v1194 = vadd.s32 %v1189, %v1193
    %v1195 = vadd.s32 %v1194, 536870912
    %v1196 = vshrl.u32 %v1195, 30
    %v1197 = vshll.u32 %v1196, 30
    %v1198 = vsub.s32 %v1194, %v1197
    %vm1199 = vcmp.lt.s32.totalorder %v1198, 0
    %v1200 = vsub.s32 0, %v1198
    %v1201 = vsel %vm1199, %v1200, %v1198
    %v1202 = vclz %v1201
    %v1203 = vsub.s32 %v1202, 2
    %vm1204 = vcmp.gt.s32.totalorder 0, %v1203
    %v1205 = vsel %vm1204, 0, %v1203
    %v1206 = vsub.s32 32, %v1205
    %v1207 = vshll.u32 %v1198, %v1205
    %v1208 = vshrl.u32 %v1190, %v1206
    %v1209 = vor.u32 %v1207, %v1208
    %v1210 = vsub.s32 4294967266, %v1205
    %v1211 = vadd.s32 %v1210, 127
    %v1212 = vshll.u32 %v1211, 23
    %v1213 = vor.u32 4788187, %v1212
    %v1214 = vand.u32 2147483647, %v1213
    %v1216 = vcvt.s32.f32 %v1209
    %v1217 = vmul.f32 %v1216, %v1214
    %v1218 = vxor.u32 %v1217, 2147483648
    %v1219 = vsel %vm1136, %v1218, %v1217
    %v1220 = vsub.s32 4, %v1196
    %v1221 = vsel %vm1136, %v1220, %v1196
    %v1222 = vsel %vm1135, %v88, %v1219
    %v1223 = vsel %vm1135, 0, %v1221
    %v1224 = vcosq.f32.pop %v1222
    %v1225 = vsinq.f32.pop %v1222
    %vm1226 = vweird.f32 %v88
    %v1227 = vadd.s32 %v1223, 3
    %v1228 = vand.u32 %v1227, 3
    %vm1229 = vcmp.lt.s32.totalorder %v1228, 2
    %vm1230 = vcmp.eq.s32.totalorder %v1228, 0
    %v1231 = vxor.u32 %v1225, 2147483648
    %v1232 = vsel %vm1230, %v1224, %v1231
    %vm1233 = vcmp.eq.s32.totalorder %v1228, 2
    %v1234 = vxor.u32 %v1224, 2147483648
    %v1235 = vsel %vm1233, %v1234, %v1225
    %v1236 = vsel %vm1229, %v1232, %v1235
    %v1237 = vsel %vm1226, nan, %v1236
    %v1238 = vand.u32 2147483647, %v89
    %vm1239 = vcmp.le.f32.partialorder %v1238, 0.7853982
    %vm1240 = vcmp.lt.s32.totalorder %v89, 0
    %v1241 = vand.u32 %v89, 2139095040
    %v1242 = vshrl.u32 %v1241, 23
    %v1243 = vsub.s32 %v1242, 127
    %v1244 = vand.u32 2147483647, %v89
    %v1245 = vand.u32 %v1244, 8388607
    %v1246 = vor.u32 %v1245, 8388608
    %v1247 = vsub.s32 0, %v1246
    %v1248 = vadd.s32 %v1243, 1
    %vm1249 = vcmp.gt.s32.totalorder %v1248, 0
    %v1250 = vsel %vm1249, %v1248, 0
    %v1251 = vshrl.u32 %v1250, 5
    %v1252 = vand.u32 %v1250, 31
    %v1253 = vsub.s32 32, %v1252
    %v1254 = vshrl.u32 683565275, %v1253
    %v1255 = vshll.u32 683565275, %v1252
    %v1256 = vshrl.u32 2475754826, %v1253
    %v1257 = vor.u32 %v1255, %v1256
    %v1258 = vshll.u32 2475754826, %v1252
    %v1259 = vshrl.u32 2131351028, %v1253
    %v1260 = vor.u32 %v1258, %v1259
    %v1261 = vshll.u32 2131351028, %v1252
    %v1262 = vshrl.u32 2102212464, %v1253
    %v1263 = vor.u32 %v1261, %v1262
    %v1264 = vshll.u32 2102212464, %v1252
    %v1265 = vshrl.u32 920167782, %v1253
    %v1266 = vor.u32 %v1264, %v1265
    %v1267 = vshll.u32 920167782, %v1252
    %v1268 = vshrl.u32 1326507024, %v1253
    %v1269 = vor.u32 %v1267, %v1268
    %vm1270 = vcmp.lt.s32.totalorder %v1251, 1
    %vm1271 = vcmp.lt.s32.totalorder %v1251, 2
    %vm1272 = vcmp.lt.s32.totalorder %v1251, 3
    %vm1273 = vcmp.lt.s32.totalorder %v1251, 4
    %v1274 = vsel %vm1270, %v1254, %v1257
    %v1275 = vsel %vm1273, %v1263, 2102212464
    %v1276 = vsel %vm1272, %v1260, %v1275
    %v1277 = vsel %vm1271, %v1274, %v1276
    %v1278 = vsel %vm1270, %v1257, %v1260
    %v1279 = vsel %vm1273, %v1266, 920167782
    %v1280 = vsel %vm1272, %v1263, %v1279
    %v1281 = vsel %vm1271, %v1278, %v1280
    %v1282 = vsel %vm1270, %v1260, %v1263
    %v1283 = vsel %vm1273, %v1269, 1326507024
    %v1284 = vsel %vm1272, %v1266, %v1283
    %v1285 = vsel %vm1271, %v1282, %v1284
    %v1286 = vshll.u32 %v1246, 8
    %v1287 = vmul.u32.u64.compose %v1286, %v1285
    %v1288 = vextract.low.u32 %v1287
    %v1289 = vextract.high.u32 %v1287
    %v1290 = vmul.u32.u64.compose %v1286, %v1281
    %v1291 = vextract.low.u32 %v1290
    %v1292 = vextract.high.u32 %v1290
    %v1293 = vmul.u32 %v1286, %v1277
    %v1294 = vadd.s32 %v1289, %v1291
    %vm1295 = vc.u32 %v1289, %v1291
    %v1296 = vadd.s32 %v1292, 1
    %v1297 = vsel %vm1295, %v1296, %v1292
    %v1298 = vadd.s32 %v1293, %v1297
    %v1299 = vadd.s32 %v1298, 536870912
    %v1300 = vshrl.u32 %v1299, 30
    %v1301 = vshll.u32 %v1300, 30
    %v1302 = vsub.s32 %v1298, %v1301
    %vm1303 = vcmp.lt.s32.totalorder %v1302, 0
    %v1304 = vsub.s32 0, %v1302
    %v1305 = vsel %vm1303, %v1304, %v1302
    %v1306 = vclz %v1305
    %v1307 = vsub.s32 %v1306, 2
    %vm1308 = vcmp.gt.s32.totalorder 0, %v1307
    %v1309 = vsel %vm1308, 0, %v1307
    %v1310 = vsub.s32 32, %v1309
    %v1311 = vshll.u32 %v1302, %v1309
    %v1312 = vshrl.u32 %v1294, %v1310
    %v1313 = vor.u32 %v1311, %v1312
    %v1314 = vsub.s32 4294967266, %v1309
    %v1315 = vadd.s32 %v1314, 127
    %v1316 = vshll.u32 %v1315, 23
    %v1317 = vor.u32 4788187, %v1316
    %v1318 = vand.u32 2147483647, %v1317
    %v1320 = vcvt.s32.f32 %v1313
    %v1321 = vmul.f32 %v1320, %v1318
    %v1322 = vxor.u32 %v1321, 2147483648
    %v1323 = vsel %vm1240, %v1322, %v1321
    %v1324 = vsub.s32 4, %v1300
    %v1325 = vsel %vm1240, %v1324, %v1300
    %v1326 = vsel %vm1239, %v89, %v1323
    %v1327 = vsel %vm1239, 0, %v1325
    %v1328 = vcosq.f32.pop %v1326
    %v1329 = vsinq.f32.pop %v1326
    %vm1330 = vweird.f32 %v89
    %v1331 = vadd.s32 %v1327, 3
    %v1332 = vand.u32 %v1331, 3
    %vm1333 = vcmp.lt.s32.totalorder %v1332, 2
    %vm1334 = vcmp.eq.s32.totalorder %v1332, 0
    %v1335 = vxor.u32 %v1329, 2147483648
    %v1336 = vsel %vm1334, %v1328, %v1335
    %vm1337 = vcmp.eq.s32.totalorder %v1332, 2
    %v1338 = vxor.u32 %v1328, 2147483648
    %v1339 = vsel %vm1337, %v1338, %v1329
    %v1340 = vsel %vm1333, %v1336, %v1339
    %v1341 = vsel %vm1330, nan, %v1340
    %v1342 = vand.u32 2147483647, %v90
    %vm1343 = vcmp.le.f32.partialorder %v1342, 0.7853982
    %vm1344 = vcmp.lt.s32.totalorder %v90, 0
    %v1345 = vand.u32 %v90, 2139095040
    %v1346 = vshrl.u32 %v1345, 23
    %v1347 = vsub.s32 %v1346, 127
    %v1348 = vand.u32 2147483647, %v90
    %v1349 = vand.u32 %v1348, 8388607
    %v1350 = vor.u32 %v1349, 8388608
    %v1351 = vsub.s32 0, %v1350
    %v1352 = vadd.s32 %v1347, 1
    %vm1353 = vcmp.gt.s32.totalorder %v1352, 0
    %v1354 = vsel %vm1353, %v1352, 0
    %v1355 = vshrl.u32 %v1354, 5
    %v1356 = vand.u32 %v1354, 31
    %v1357 = vsub.s32 32, %v1356
    %v1358 = vshrl.u32 683565275, %v1357
    %v1359 = vshll.u32 683565275, %v1356
    %v1360 = vshrl.u32 2475754826, %v1357
    %v1361 = vor.u32 %v1359, %v1360
    %v1362 = vshll.u32 2475754826, %v1356
    %v1363 = vshrl.u32 2131351028, %v1357
    %v1364 = vor.u32 %v1362, %v1363
    %v1365 = vshll.u32 2131351028, %v1356
    %v1366 = vshrl.u32 2102212464, %v1357
    %v1367 = vor.u32 %v1365, %v1366
    %v1368 = vshll.u32 2102212464, %v1356
    %v1369 = vshrl.u32 920167782, %v1357
    %v1370 = vor.u32 %v1368, %v1369
    %v1371 = vshll.u32 920167782, %v1356
    %v1372 = vshrl.u32 1326507024, %v1357
    %v1373 = vor.u32 %v1371, %v1372
    %vm1374 = vcmp.lt.s32.totalorder %v1355, 1
    %vm1375 = vcmp.lt.s32.totalorder %v1355, 2
    %vm1376 = vcmp.lt.s32.totalorder %v1355, 3
    %vm1377 = vcmp.lt.s32.totalorder %v1355, 4
    %v1378 = vsel %vm1374, %v1358, %v1361
    %v1379 = vsel %vm1377, %v1367, 2102212464
    %v1380 = vsel %vm1376, %v1364, %v1379
    %v1381 = vsel %vm1375, %v1378, %v1380
    %v1382 = vsel %vm1374, %v1361, %v1364
    %v1383 = vsel %vm1377, %v1370, 920167782
    %v1384 = vsel %vm1376, %v1367, %v1383
    %v1385 = vsel %vm1375, %v1382, %v1384
    %v1386 = vsel %vm1374, %v1364, %v1367
    %v1387 = vsel %vm1377, %v1373, 1326507024
    %v1388 = vsel %vm1376, %v1370, %v1387
    %v1389 = vsel %vm1375, %v1386, %v1388
    %v1390 = vshll.u32 %v1350, 8
    %v1391 = vmul.u32.u64.compose %v1390, %v1389
    %v1392 = vextract.low.u32 %v1391
    %v1393 = vextract.high.u32 %v1391
    %v1394 = vmul.u32.u64.compose %v1390, %v1385
    %v1395 = vextract.low.u32 %v1394
    %v1396 = vextract.high.u32 %v1394
    %v1397 = vmul.u32 %v1390, %v1381
    %v1398 = vadd.s32 %v1393, %v1395
    %vm1399 = vc.u32 %v1393, %v1395
    %v1400 = vadd.s32 %v1396, 1
    %v1401 = vsel %vm1399, %v1400, %v1396
    %v1402 = vadd.s32 %v1397, %v1401
    %v1403 = vadd.s32 %v1402, 536870912
    %v1404 = vshrl.u32 %v1403, 30
    %v1405 = vshll.u32 %v1404, 30
    %v1406 = vsub.s32 %v1402, %v1405
    %vm1407 = vcmp.lt.s32.totalorder %v1406, 0
    %v1408 = vsub.s32 0, %v1406
    %v1409 = vsel %vm1407, %v1408, %v1406
    %v1410 = vclz %v1409
    %v1411 = vsub.s32 %v1410, 2
    %vm1412 = vcmp.gt.s32.totalorder 0, %v1411
    %v1413 = vsel %vm1412, 0, %v1411
    %v1414 = vsub.s32 32, %v1413
    %v1415 = vshll.u32 %v1406, %v1413
    %v1416 = vshrl.u32 %v1398, %v1414
    %v1417 = vor.u32 %v1415, %v1416
    %v1418 = vsub.s32 4294967266, %v1413
    %v1419 = vadd.s32 %v1418, 127
    %v1420 = vshll.u32 %v1419, 23
    %v1421 = vor.u32 4788187, %v1420
    %v1422 = vand.u32 2147483647, %v1421
    %v1424 = vcvt.s32.f32 %v1417
    %v1425 = vmul.f32 %v1424, %v1422
    %v1426 = vxor.u32 %v1425, 2147483648
    %v1427 = vsel %vm1344, %v1426, %v1425
    %v1428 = vsub.s32 4, %v1404
    %v1429 = vsel %vm1344, %v1428, %v1404
    %v1430 = vsel %vm1343, %v90, %v1427
    %v1431 = vsel %vm1343, 0, %v1429
    %v1432 = vcosq.f32.pop %v1430
    %v1433 = vsinq.f32.pop %v1430
    %vm1434 = vweird.f32 %v90
    %v1435 = vadd.s32 %v1431, 3
    %v1436 = vand.u32 %v1435, 3
    %vm1437 = vcmp.lt.s32.totalorder %v1436, 2
    %vm1438 = vcmp.eq.s32.totalorder %v1436, 0
    %v1439 = vxor.u32 %v1433, 2147483648
    %v1440 = vsel %vm1438, %v1432, %v1439
    %vm1441 = vcmp.eq.s32.totalorder %v1436, 2
    %v1442 = vxor.u32 %v1432, 2147483648
    %v1443 = vsel %vm1441, %v1442, %v1433
    %v1444 = vsel %vm1437, %v1440, %v1443
    %v1445 = vsel %vm1434, nan, %v1444
    %v1446 = vand.u32 2147483647, %v91
    %vm1447 = vcmp.le.f32.partialorder %v1446, 0.7853982
    %vm1448 = vcmp.lt.s32.totalorder %v91, 0
    %v1449 = vand.u32 %v91, 2139095040
    %v1450 = vshrl.u32 %v1449, 23
    %v1451 = vsub.s32 %v1450, 127
    %v1452 = vand.u32 2147483647, %v91
    %v1453 = vand.u32 %v1452, 8388607
    %v1454 = vor.u32 %v1453, 8388608
    %v1455 = vsub.s32 0, %v1454
    %v1456 = vadd.s32 %v1451, 1
    %vm1457 = vcmp.gt.s32.totalorder %v1456, 0
    %v1458 = vsel %vm1457, %v1456, 0
    %v1459 = vshrl.u32 %v1458, 5
    %v1460 = vand.u32 %v1458, 31
    %v1461 = vsub.s32 32, %v1460
    %v1462 = vshrl.u32 683565275, %v1461
    %v1463 = vshll.u32 683565275, %v1460
    %v1464 = vshrl.u32 2475754826, %v1461
    %v1465 = vor.u32 %v1463, %v1464
    %v1466 = vshll.u32 2475754826, %v1460
    %v1467 = vshrl.u32 2131351028, %v1461
    %v1468 = vor.u32 %v1466, %v1467
    %v1469 = vshll.u32 2131351028, %v1460
    %v1470 = vshrl.u32 2102212464, %v1461
    %v1471 = vor.u32 %v1469, %v1470
    %v1472 = vshll.u32 2102212464, %v1460
    %v1473 = vshrl.u32 920167782, %v1461
    %v1474 = vor.u32 %v1472, %v1473
    %v1475 = vshll.u32 920167782, %v1460
    %v1476 = vshrl.u32 1326507024, %v1461
    %v1477 = vor.u32 %v1475, %v1476
    %vm1478 = vcmp.lt.s32.totalorder %v1459, 1
    %vm1479 = vcmp.lt.s32.totalorder %v1459, 2
    %vm1480 = vcmp.lt.s32.totalorder %v1459, 3
    %vm1481 = vcmp.lt.s32.totalorder %v1459, 4
    %v1482 = vsel %vm1478, %v1462, %v1465
    %v1483 = vsel %vm1481, %v1471, 2102212464
    %v1484 = vsel %vm1480, %v1468, %v1483
    %v1485 = vsel %vm1479, %v1482, %v1484
    %v1486 = vsel %vm1478, %v1465, %v1468
    %v1487 = vsel %vm1481, %v1474, 920167782
    %v1488 = vsel %vm1480, %v1471, %v1487
    %v1489 = vsel %vm1479, %v1486, %v1488
    %v1490 = vsel %vm1478, %v1468, %v1471
    %v1491 = vsel %vm1481, %v1477, 1326507024
    %v1492 = vsel %vm1480, %v1474, %v1491
    %v1493 = vsel %vm1479, %v1490, %v1492
    %v1494 = vshll.u32 %v1454, 8
    %v1495 = vmul.u32.u64.compose %v1494, %v1493
    %v1496 = vextract.low.u32 %v1495
    %v1497 = vextract.high.u32 %v1495
    %v1498 = vmul.u32.u64.compose %v1494, %v1489
    %v1499 = vextract.low.u32 %v1498
    %v1500 = vextract.high.u32 %v1498
    %v1501 = vmul.u32 %v1494, %v1485
    %v1502 = vadd.s32 %v1497, %v1499
    %vm1503 = vc.u32 %v1497, %v1499
    %v1504 = vadd.s32 %v1500, 1
    %v1505 = vsel %vm1503, %v1504, %v1500
    %v1506 = vadd.s32 %v1501, %v1505
    %v1507 = vadd.s32 %v1506, 536870912
    %v1508 = vshrl.u32 %v1507, 30
    %v1509 = vshll.u32 %v1508, 30
    %v1510 = vsub.s32 %v1506, %v1509
    %vm1511 = vcmp.lt.s32.totalorder %v1510, 0
    %v1512 = vsub.s32 0, %v1510
    %v1513 = vsel %vm1511, %v1512, %v1510
    %v1514 = vclz %v1513
    %v1515 = vsub.s32 %v1514, 2
    %vm1516 = vcmp.gt.s32.totalorder 0, %v1515
    %v1517 = vsel %vm1516, 0, %v1515
    %v1518 = vsub.s32 32, %v1517
    %v1519 = vshll.u32 %v1510, %v1517
    %v1520 = vshrl.u32 %v1502, %v1518
    %v1521 = vor.u32 %v1519, %v1520
    %v1522 = vsub.s32 4294967266, %v1517
    %v1523 = vadd.s32 %v1522, 127
    %v1524 = vshll.u32 %v1523, 23
    %v1525 = vor.u32 4788187, %v1524
    %v1526 = vand.u32 2147483647, %v1525
    %v1528 = vcvt.s32.f32 %v1521
    %v1529 = vmul.f32 %v1528, %v1526
    %v1530 = vxor.u32 %v1529, 2147483648
    %v1531 = vsel %vm1448, %v1530, %v1529
    %v1532 = vsub.s32 4, %v1508
    %v1533 = vsel %vm1448, %v1532, %v1508
    %v1534 = vsel %vm1447, %v91, %v1531
    %v1535 = vsel %vm1447, 0, %v1533
    %v1536 = vcosq.f32.pop %v1534
    %v1537 = vsinq.f32.pop %v1534
    %vm1538 = vweird.f32 %v91
    %v1539 = vadd.s32 %v1535, 3
    %v1540 = vand.u32 %v1539, 3
    %vm1541 = vcmp.lt.s32.totalorder %v1540, 2
    %vm1542 = vcmp.eq.s32.totalorder %v1540, 0
    %v1543 = vxor.u32 %v1537, 2147483648
    %v1544 = vsel %vm1542, %v1536, %v1543
    %vm1545 = vcmp.eq.s32.totalorder %v1540, 2
    %v1546 = vxor.u32 %v1536, 2147483648
    %v1547 = vsel %vm1545, %v1546, %v1537
    %v1548 = vsel %vm1541, %v1544, %v1547
    %v1549 = vsel %vm1538, nan, %v1548
    %v1550 = vand.u32 2147483647, %v92
    %vm1551 = vcmp.le.f32.partialorder %v1550, 0.7853982
    %vm1552 = vcmp.lt.s32.totalorder %v92, 0
    %v1553 = vand.u32 %v92, 2139095040
    %v1554 = vshrl.u32 %v1553, 23
    %v1555 = vsub.s32 %v1554, 127
    %v1556 = vand.u32 2147483647, %v92
    %v1557 = vand.u32 %v1556, 8388607
    %v1558 = vor.u32 %v1557, 8388608
    %v1559 = vsub.s32 0, %v1558
    %v1560 = vadd.s32 %v1555, 1
    %vm1561 = vcmp.gt.s32.totalorder %v1560, 0
    %v1562 = vsel %vm1561, %v1560, 0
    %v1563 = vshrl.u32 %v1562, 5
    %v1564 = vand.u32 %v1562, 31
    %v1565 = vsub.s32 32, %v1564
    %v1566 = vshrl.u32 683565275, %v1565
    %v1567 = vshll.u32 683565275, %v1564
    %v1568 = vshrl.u32 2475754826, %v1565
    %v1569 = vor.u32 %v1567, %v1568
    %v1570 = vshll.u32 2475754826, %v1564
    %v1571 = vshrl.u32 2131351028, %v1565
    %v1572 = vor.u32 %v1570, %v1571
    %v1573 = vshll.u32 2131351028, %v1564
    %v1574 = vshrl.u32 2102212464, %v1565
    %v1575 = vor.u32 %v1573, %v1574
    %v1576 = vshll.u32 2102212464, %v1564
    %v1577 = vshrl.u32 920167782, %v1565
    %v1578 = vor.u32 %v1576, %v1577
    %v1579 = vshll.u32 920167782, %v1564
    %v1580 = vshrl.u32 1326507024, %v1565
    %v1581 = vor.u32 %v1579, %v1580
    %vm1582 = vcmp.lt.s32.totalorder %v1563, 1
    %vm1583 = vcmp.lt.s32.totalorder %v1563, 2
    %vm1584 = vcmp.lt.s32.totalorder %v1563, 3
    %vm1585 = vcmp.lt.s32.totalorder %v1563, 4
    %v1586 = vsel %vm1582, %v1566, %v1569
    %v1587 = vsel %vm1585, %v1575, 2102212464
    %v1588 = vsel %vm1584, %v1572, %v1587
    %v1589 = vsel %vm1583, %v1586, %v1588
    %v1590 = vsel %vm1582, %v1569, %v1572
    %v1591 = vsel %vm1585, %v1578, 920167782
    %v1592 = vsel %vm1584, %v1575, %v1591
    %v1593 = vsel %vm1583, %v1590, %v1592
    %v1594 = vsel %vm1582, %v1572, %v1575
    %v1595 = vsel %vm1585, %v1581, 1326507024
    %v1596 = vsel %vm1584, %v1578, %v1595
    %v1597 = vsel %vm1583, %v1594, %v1596
    %v1598 = vshll.u32 %v1558, 8
    %v1599 = vmul.u32.u64.compose %v1598, %v1597
    %v1600 = vextract.low.u32 %v1599
    %v1601 = vextract.high.u32 %v1599
    %v1602 = vmul.u32.u64.compose %v1598, %v1593
    %v1603 = vextract.low.u32 %v1602
    %v1604 = vextract.high.u32 %v1602
    %v1605 = vmul.u32 %v1598, %v1589
    %v1606 = vadd.s32 %v1601, %v1603
    %vm1607 = vc.u32 %v1601, %v1603
    %v1608 = vadd.s32 %v1604, 1
    %v1609 = vsel %vm1607, %v1608, %v1604
    %v1610 = vadd.s32 %v1605, %v1609
    %v1611 = vadd.s32 %v1610, 536870912
    %v1612 = vshrl.u32 %v1611, 30
    %v1613 = vshll.u32 %v1612, 30
    %v1614 = vsub.s32 %v1610, %v1613
    %vm1615 = vcmp.lt.s32.totalorder %v1614, 0
    %v1616 = vsub.s32 0, %v1614
    %v1617 = vsel %vm1615, %v1616, %v1614
    %v1618 = vclz %v1617
    %v1619 = vsub.s32 %v1618, 2
    %vm1620 = vcmp.gt.s32.totalorder 0, %v1619
    %v1621 = vsel %vm1620, 0, %v1619
    %v1622 = vsub.s32 32, %v1621
    %v1623 = vshll.u32 %v1614, %v1621
    %v1624 = vshrl.u32 %v1606, %v1622
    %v1625 = vor.u32 %v1623, %v1624
    %v1626 = vsub.s32 4294967266, %v1621
    %v1627 = vadd.s32 %v1626, 127
    %v1628 = vshll.u32 %v1627, 23
    %v1629 = vor.u32 4788187, %v1628
    %v1630 = vand.u32 2147483647, %v1629
    %v1632 = vcvt.s32.f32 %v1625
    %v1633 = vmul.f32 %v1632, %v1630
    %v1634 = vxor.u32 %v1633, 2147483648
    %v1635 = vsel %vm1552, %v1634, %v1633
    %v1636 = vsub.s32 4, %v1612
    %v1637 = vsel %vm1552, %v1636, %v1612
    %v1638 = vsel %vm1551, %v92, %v1635
    %v1639 = vsel %vm1551, 0, %v1637
    %v1640 = vcosq.f32.pop %v1638
    %v1641 = vsinq.f32.pop %v1638
    %vm1642 = vweird.f32 %v92
    %v1643 = vadd.s32 %v1639, 3
    %v1644 = vand.u32 %v1643, 3
    %vm1645 = vcmp.lt.s32.totalorder %v1644, 2
    %vm1646 = vcmp.eq.s32.totalorder %v1644, 0
    %v1647 = vxor.u32 %v1641, 2147483648
    %v1648 = vsel %vm1646, %v1640, %v1647
    %vm1649 = vcmp.eq.s32.totalorder %v1644, 2
    %v1650 = vxor.u32 %v1640, 2147483648
    %v1651 = vsel %vm1649, %v1650, %v1641
    %v1652 = vsel %vm1645, %v1648, %v1651
    %v1653 = vsel %vm1642, nan, %v1652
    %v1654 = vand.u32 2147483647, %v93
    %vm1655 = vcmp.le.f32.partialorder %v1654, 0.7853982
    %vm1656 = vcmp.lt.s32.totalorder %v93, 0
    %v1657 = vand.u32 %v93, 2139095040
    %v1658 = vshrl.u32 %v1657, 23
    %v1659 = vsub.s32 %v1658, 127
    %v1660 = vand.u32 2147483647, %v93
    %v1661 = vand.u32 %v1660, 8388607
    %v1662 = vor.u32 %v1661, 8388608
    %v1663 = vsub.s32 0, %v1662
    %v1664 = vadd.s32 %v1659, 1
    %vm1665 = vcmp.gt.s32.totalorder %v1664, 0
    %v1666 = vsel %vm1665, %v1664, 0
    %v1667 = vshrl.u32 %v1666, 5
    %v1668 = vand.u32 %v1666, 31
    %v1669 = vsub.s32 32, %v1668
    %v1670 = vshrl.u32 683565275, %v1669
    %v1671 = vshll.u32 683565275, %v1668
    %v1672 = vshrl.u32 2475754826, %v1669
    %v1673 = vor.u32 %v1671, %v1672
    %v1674 = vshll.u32 2475754826, %v1668
    %v1675 = vshrl.u32 2131351028, %v1669
    %v1676 = vor.u32 %v1674, %v1675
    %v1677 = vshll.u32 2131351028, %v1668
    %v1678 = vshrl.u32 2102212464, %v1669
    %v1679 = vor.u32 %v1677, %v1678
    %v1680 = vshll.u32 2102212464, %v1668
    %v1681 = vshrl.u32 920167782, %v1669
    %v1682 = vor.u32 %v1680, %v1681
    %v1683 = vshll.u32 920167782, %v1668
    %v1684 = vshrl.u32 1326507024, %v1669
    %v1685 = vor.u32 %v1683, %v1684
    %vm1686 = vcmp.lt.s32.totalorder %v1667, 1
    %vm1687 = vcmp.lt.s32.totalorder %v1667, 2
    %vm1688 = vcmp.lt.s32.totalorder %v1667, 3
    %vm1689 = vcmp.lt.s32.totalorder %v1667, 4
    %v1690 = vsel %vm1686, %v1670, %v1673
    %v1691 = vsel %vm1689, %v1679, 2102212464
    %v1692 = vsel %vm1688, %v1676, %v1691
    %v1693 = vsel %vm1687, %v1690, %v1692
    %v1694 = vsel %vm1686, %v1673, %v1676
    %v1695 = vsel %vm1689, %v1682, 920167782
    %v1696 = vsel %vm1688, %v1679, %v1695
    %v1697 = vsel %vm1687, %v1694, %v1696
    %v1698 = vsel %vm1686, %v1676, %v1679
    %v1699 = vsel %vm1689, %v1685, 1326507024
    %v1700 = vsel %vm1688, %v1682, %v1699
    %v1701 = vsel %vm1687, %v1698, %v1700
    %v1702 = vshll.u32 %v1662, 8
    %v1703 = vmul.u32.u64.compose %v1702, %v1701
    %v1704 = vextract.low.u32 %v1703
    %v1705 = vextract.high.u32 %v1703
    %v1706 = vmul.u32.u64.compose %v1702, %v1697
    %v1707 = vextract.low.u32 %v1706
    %v1708 = vextract.high.u32 %v1706
    %v1709 = vmul.u32 %v1702, %v1693
    %v1710 = vadd.s32 %v1705, %v1707
    %vm1711 = vc.u32 %v1705, %v1707
    %v1712 = vadd.s32 %v1708, 1
    %v1713 = vsel %vm1711, %v1712, %v1708
    %v1714 = vadd.s32 %v1709, %v1713
    %v1715 = vadd.s32 %v1714, 536870912
    %v1716 = vshrl.u32 %v1715, 30
    %v1717 = vshll.u32 %v1716, 30
    %v1718 = vsub.s32 %v1714, %v1717
    %vm1719 = vcmp.lt.s32.totalorder %v1718, 0
    %v1720 = vsub.s32 0, %v1718
    %v1721 = vsel %vm1719, %v1720, %v1718
    %v1722 = vclz %v1721
    %v1723 = vsub.s32 %v1722, 2
    %vm1724 = vcmp.gt.s32.totalorder 0, %v1723
    %v1725 = vsel %vm1724, 0, %v1723
    %v1726 = vsub.s32 32, %v1725
    %v1727 = vshll.u32 %v1718, %v1725
    %v1728 = vshrl.u32 %v1710, %v1726
    %v1729 = vor.u32 %v1727, %v1728
    %v1730 = vsub.s32 4294967266, %v1725
    %v1731 = vadd.s32 %v1730, 127
    %v1732 = vshll.u32 %v1731, 23
    %v1733 = vor.u32 4788187, %v1732
    %v1734 = vand.u32 2147483647, %v1733
    %v1736 = vcvt.s32.f32 %v1729
    %v1737 = vmul.f32 %v1736, %v1734
    %v1738 = vxor.u32 %v1737, 2147483648
    %v1739 = vsel %vm1656, %v1738, %v1737
    %v1740 = vsub.s32 4, %v1716
    %v1741 = vsel %vm1656, %v1740, %v1716
    %v1742 = vsel %vm1655, %v93, %v1739
    %v1743 = vsel %vm1655, 0, %v1741
    %v1744 = vcosq.f32.pop %v1742
    %v1745 = vsinq.f32.pop %v1742
    %vm1746 = vweird.f32 %v93
    %v1747 = vadd.s32 %v1743, 3
    %v1748 = vand.u32 %v1747, 3
    %vm1749 = vcmp.lt.s32.totalorder %v1748, 2
    %vm1750 = vcmp.eq.s32.totalorder %v1748, 0
    %v1751 = vxor.u32 %v1745, 2147483648
    %v1752 = vsel %vm1750, %v1744, %v1751
    %vm1753 = vcmp.eq.s32.totalorder %v1748, 2
    %v1754 = vxor.u32 %v1744, 2147483648
    %v1755 = vsel %vm1753, %v1754, %v1745
    %v1756 = vsel %vm1749, %v1752, %v1755
    %v1757 = vsel %vm1746, nan, %v1756
    %v1758 = vld [vmem:[#allocation2] sm:$0xff]
    %v1775 = vlaneseq
    %v1776 = vshrl.u32 %v1775, 7
    %v1777 = vsub.s32 0, %v1776
    %v1778 = vrot.slane %v197, %v1777
    %v1779 = vlaneseq
    %v1780 = vshrl.u32 %v1779, 7
    %v1781 = vsub.s32 0, %v1780
    %v1782 = vrot.slane %v301, %v1781
    %v1783 = vlaneseq
    %v1784 = vshrl.u32 %v1783, 7
    %v1785 = vsub.s32 0, %v1784
    %v1786 = vrot.slane %v405, %v1785
    %v1787 = vlaneseq
    %v1788 = vshrl.u32 %v1787, 7
    %v1789 = vsub.s32 0, %v1788
    %v1790 = vrot.slane %v509, %v1789
    %v1791 = vlaneseq
    %v1792 = vshrl.u32 %v1791, 7
    %v1793 = vsub.s32 0, %v1792
    %v1794 = vrot.slane %v613, %v1793
    %v1795 = vlaneseq
    %v1796 = vshrl.u32 %v1795, 7
    %v1797 = vsub.s32 0, %v1796
    %v1798 = vrot.slane %v717, %v1797
    %v1799 = vlaneseq
    %v1800 = vshrl.u32 %v1799, 7
    %v1801 = vsub.s32 0, %v1800
    %v1802 = vrot.slane %v821, %v1801
    %v1803 = vlaneseq
    %v1804 = vshrl.u32 %v1803, 7
    %v1805 = vsub.s32 0, %v1804
    %v1806 = vrot.slane %v925, %v1805
    %v1807 = vlaneseq
    %v1808 = vshrl.u32 %v1807, 7
    %v1809 = vsub.s32 0, %v1808
    %v1810 = vrot.slane %v1029, %v1809
    %v1811 = vlaneseq
    %v1812 = vshrl.u32 %v1811, 7
    %v1813 = vsub.s32 0, %v1812
    %v1814 = vrot.slane %v1133, %v1813
    %v1815 = vlaneseq
    %v1816 = vshrl.u32 %v1815, 7
    %v1817 = vsub.s32 0, %v1816
    %v1818 = vrot.slane %v1237, %v1817
    %v1819 = vlaneseq
    %v1820 = vshrl.u32 %v1819, 7
    %v1821 = vsub.s32 0, %v1820
    %v1822 = vrot.slane %v1341, %v1821
    %v1823 = vlaneseq
    %v1824 = vshrl.u32 %v1823, 7
    %v1825 = vsub.s32 0, %v1824
    %v1826 = vrot.slane %v1445, %v1825
    %v1827 = vlaneseq
    %v1828 = vshrl.u32 %v1827, 7
    %v1829 = vsub.s32 0, %v1828
    %v1830 = vrot.slane %v1549, %v1829
    %v1831 = vlaneseq
    %v1832 = vshrl.u32 %v1831, 7
    %v1833 = vsub.s32 0, %v1832
    %v1834 = vrot.slane %v1653, %v1833
    %v1835 = vlaneseq
    %v1836 = vshrl.u32 %v1835, 7
    %v1837 = vsub.s32 0, %v1836
    %v1838 = vrot.slane %v1757, %v1837
    %v1855 = vadd.f32 %v1778, %v1758
    %v1856 = vadd.f32 %v1782, %v1758
    %v1857 = vadd.f32 %v1786, %v1758
    %v1858 = vadd.f32 %v1790, %v1758
    %v1859 = vadd.f32 %v1794, %v1758
    %v1860 = vadd.f32 %v1798, %v1758
    %v1861 = vadd.f32 %v1802, %v1758
    %v1862 = vadd.f32 %v1806, %v1758
    %v1863 = vadd.f32 %v1810, %v1758
    %v1864 = vadd.f32 %v1814, %v1758
    %v1865 = vadd.f32 %v1818, %v1758
    %v1866 = vadd.f32 %v1822, %v1758
    %v1867 = vadd.f32 %v1826, %v1758
    %v1868 = vadd.f32 %v1830, %v1758
    %v1869 = vadd.f32 %v1834, %v1758
    %v1870 = vadd.f32 %v1838, %v1758
    %1871 = vst [vmem:[#allocation5] sm:$0xff] %v1855
    %1872 = vst [vmem:[#allocation5 + $0x8] sm:$0xff] %v1856
    %1873 = vst [vmem:[#allocation5 + $0x10] sm:$0xff] %v1857
    %1874 = vst [vmem:[#allocation5 + $0x18] sm:$0xff] %v1858
    %1875 = vst [vmem:[#allocation5 + $0x20] sm:$0xff] %v1859
    %1876 = vst [vmem:[#allocation5 + $0x28] sm:$0xff] %v1860
    %1877 = vst [vmem:[#allocation5 + $0x30] sm:$0xff] %v1861
    %1878 = vst [vmem:[#allocation5 + $0x38] sm:$0xff] %v1862
    %1879 = vst [vmem:[#allocation5 + $0x40] sm:$0xff] %v1863
    %1880 = vst [vmem:[#allocation5 + $0x48] sm:$0xff] %v1864
    %1881 = vst [vmem:[#allocation5 + $0x50] sm:$0xff] %v1865
    %1882 = vst [vmem:[#allocation5 + $0x58] sm:$0xff] %v1866
    %1883 = vst [vmem:[#allocation5 + $0x60] sm:$0xff] %v1867
    %1884 = vst [vmem:[#allocation5 + $0x68] sm:$0xff] %v1868
    %1885 = vst [vmem:[#allocation5 + $0x70] sm:$0xff] %v1869
    %1886 = vst [vmem:[#allocation5 + $0x78] sm:$0xff] %v1870
    // Predicated region
    $region18: #{tpu_custom_call.1} parent=1 // pred_check
      _
    $region19: #{tpu_custom_call.1} parent=1 // pred_check_branch
      %1888 = sbr.rel (0) target = $region21
    $region20: #{tpu_custom_call.1} parent=1 // pred_region
      %s1890 = ssub.s32 2048, 2048
      %1891 = vsyncadd [#allocation4], %s1890
      %s1892 = sshll.u32 [#allocation5], 4
      %s1893 = int_to_ptr.vmem [resolvable:$true] %s1892
      %1898 = dma.vmem_to_hbm [thread:$0]  %s1893, 2048, %s3, [#allocation4], 128, 128, 8
    $region21: #{tpu_custom_call.1} parent=1 // pred_fallthru
      _
    // Predicated region
    $region22: #{tpu_custom_call.1} parent=1 // pred_check
      _
    $region23: #{tpu_custom_call.1} parent=1 // pred_check_branch
      %1900 = sbr.rel (0) target = $region25
    $region24: #{tpu_custom_call.1} parent=1 // pred_region
      %1901 = dma.done [#allocation4], 2048
    $region25: #{tpu_custom_call.1} parent=1 // pred_fallthru
      _
    %1902 = vsyncpa [#allocation3], 1
    %1903 = vsyncpa [#allocation4], 1

</llo_original>
